<compile_context>
chip_gen: v5e
topology: v5e:2x2
jax: 0.10.0
libtpu: 0.0.40
codegen_flags: <defaults>
</compile_context>

<pallas_src>
import functools

import jax
import jax.numpy as jnp
from jax import lax
from jax.experimental import pallas as pl
from jax.experimental.pallas import tpu as pltpu


def _sigmoid(x):
    # exp goes to the EUP; approx reciprocal also lands on the EUP slot
    # (per perf review) instead of a VPU divide sequence.
    return pl.reciprocal(1.0 + jnp.exp(-x), approx=True)


def _lstm_cell(x, h, c, w_stacked, b):
    """PyTorch LSTMCell with the two gate matmuls fused into one.

    gates = [x, h] @ W_stacked + (b_ih + b_hh), W_stacked: (in+H, 4H).
    """
    xh = jnp.concatenate([x, h], axis=-1)
    gates = jnp.dot(xh, w_stacked, preferred_element_type=jnp.float32) + b
    H = h.shape[-1]
    i = _sigmoid(gates[:, 0 * H:1 * H])
    f = _sigmoid(gates[:, 1 * H:2 * H])
    g = jnp.tanh(gates[:, 2 * H:3 * H])
    o = _sigmoid(gates[:, 3 * H:4 * H])
    c_new = f * c + i * g
    h_new = o * jnp.tanh(c_new)
    return h_new, c_new


def _fused_kernel(x_ref, mask0_ref,
                  w1_ref, b1_ref, w2_ref, b2_ref, w3_ref, b3_ref,
                  wfc_ref, bfc_ref,
                  out_ref,
                  mask_s, h1_s, c1_s, h2_s, c2_s, h3_s, c3_s,
                  *, n_real, k):
    """One grid step == one timestep of the 3-layer LSTM stack + fc + relu
    + in-kernel mask update.  Recurrent state lives in VMEM scratch."""
    s = pl.program_id(0)

    @pl.when(s == 0)
    def _init():
        mask_s[...] = mask0_ref[...]
        h1_s[...] = jnp.zeros_like(h1_s)
        c1_s[...] = jnp.zeros_like(c1_s)
        h2_s[...] = jnp.zeros_like(h2_s)
        c2_s[...] = jnp.zeros_like(c2_s)
        h3_s[...] = jnp.zeros_like(h3_s)
        c3_s[...] = jnp.zeros_like(c3_s)

    x = x_ref[0] * mask_s[...]

    h1, c1 = _lstm_cell(x, h1_s[...], c1_s[...], w1_ref[...], b1_ref[...])
    h2, c2 = _lstm_cell(h1, h2_s[...], c2_s[...], w2_ref[...], b2_ref[...])
    h3, c3 = _lstm_cell(h2, h3_s[...], c3_s[...], w3_ref[...], b3_ref[...])

    h1_s[...] = h1
    c1_s[...] = c1
    h2_s[...] = h2
    c2_s[...] = c2
    h3_s[...] = h3
    c3_s[...] = c3

    out = jnp.dot(h3, wfc_ref[...], preferred_element_type=jnp.float32) + bfc_ref[...]
    out = jnp.maximum(out, 0.0)  # ReLU
    # Output block index is constant across the grid -> stays resident in
    # VMEM, written back to HBM once after the last step.
    out_ref[...] = out

    # mask = (argsort(out, axis=1) < k): position p is marked iff the p-th
    # smallest element of out has original index < k.  Computed sort-free:
    # rank(i) = #{j: out[j] < out[i]} + #{j < i: out[j] == out[i]} (stable
    # tie-break), then mask[p] = OR_{i<k} (rank(i) == p).  Only the first
    # n_real (un-padded) columns participate (padded cols forced to +inf).
    B, Np = out.shape
    col = lax.broadcasted_iota(jnp.int32, (B, Np), 1)
    colf = col.astype(jnp.float32)
    out_v = jnp.where(col < n_real, out, jnp.float32(jnp.inf))

    new_mask = jnp.zeros_like(out)
    for i in range(k):  # k is small & static (4) -> unrolled, 2-D VPU ops only
        v_i = jnp.sum(jnp.where(col == i, out_v, 0.0), axis=1, keepdims=True)
        less = (out_v < v_i) | ((out_v == v_i) & (col < i))
        rank_i = jnp.sum(less.astype(jnp.float32), axis=1, keepdims=True)
        new_mask = new_mask + (colf == rank_i).astype(jnp.float32)
    mask_s[...] = new_mask


def _make_fused_forward(S, B_pad, N_pad, n_real, k):
    kernel = functools.partial(_fused_kernel, n_real=n_real, k=k)
    grid_spec = pltpu.PrefetchScalarGridSpec(
        num_scalar_prefetch=0,
        grid=(S,),
        in_specs=[
            pl.BlockSpec((1, B_pad, N_pad), lambda s: (s, 0, 0)),   # x, per-timestep
            pl.BlockSpec((B_pad, N_pad), lambda s: (0, 0)),         # initial mask
            pl.BlockSpec((N_pad + 128, 512), lambda s: (0, 0)),     # W1 stacked (DMA once)
            pl.BlockSpec((1, 512), lambda s: (0, 0)),               # b1
            pl.BlockSpec((384, 1024), lambda s: (0, 0)),            # W2 stacked
            pl.BlockSpec((1, 1024), lambda s: (0, 0)),              # b2
            pl.BlockSpec((384, 512), lambda s: (0, 0)),             # W3 stacked
            pl.BlockSpec((1, 512), lambda s: (0, 0)),               # b3
            pl.BlockSpec((128, N_pad), lambda s: (0, 0)),           # Wfc
            pl.BlockSpec((1, N_pad), lambda s: (0, 0)),             # bfc
        ],
        out_specs=pl.BlockSpec((B_pad, N_pad), lambda s: (0, 0)),
        scratch_shapes=[
            pltpu.VMEM((B_pad, N_pad), jnp.float32),  # mask (persists across steps)
            pltpu.VMEM((B_pad, 128), jnp.float32),    # h1
            pltpu.VMEM((B_pad, 128), jnp.float32),    # c1
            pltpu.VMEM((B_pad, 256), jnp.float32),    # h2
            pltpu.VMEM((B_pad, 256), jnp.float32),    # c2
            pltpu.VMEM((B_pad, 128), jnp.float32),    # h3
            pltpu.VMEM((B_pad, 128), jnp.float32),    # c3
        ],
    )
    # The seq axis is a serial recurrence -> "arbitrary".
    # TODO(synk): on v7x a leading "parallel" grid axis over independent
    # batches/mask_keys could occupy both TensorCores; not applicable here.
    return pl.pallas_call(
        kernel,
        out_shape=jax.ShapeDtypeStruct((B_pad, N_pad), jnp.float32),
        grid_spec=grid_spec,
        compiler_params=pltpu.CompilerParams(
            dimension_semantics=("arbitrary",),
            vmem_limit_bytes=32 * 1024 * 1024,
        ),
    )


def init_params(key, num_beams):
    """Deterministic init mimicking PyTorch's U(-1/sqrt(H), 1/sqrt(H))."""
    def uni(key, shape, bound):
        return jax.random.uniform(key, shape, jnp.float32, -bound, bound)

    keys = jax.random.split(key, 16)
    params = {}
    # LSTMCell(num_beams, 128)
    b = 1.0 / jnp.sqrt(128.0)
    params["w1i_t"] = uni(keys[0], (num_beams, 4 * 128), b)
    params["w1h_t"] = uni(keys[1], (128, 4 * 128), b)
    params["b1"] = (uni(keys[2], (1, 4 * 128), b) + uni(keys[3], (1, 4 * 128), b))
    # LSTMCell(128, 256)
    b = 1.0 / jnp.sqrt(256.0)
    params["w2i_t"] = uni(keys[4], (128, 4 * 256), b)
    params["w2h_t"] = uni(keys[5], (256, 4 * 256), b)
    params["b2"] = (uni(keys[6], (1, 4 * 256), b) + uni(keys[7], (1, 4 * 256), b))
    # LSTMCell(256, 128)
    b = 1.0 / jnp.sqrt(128.0)
    params["w3i_t"] = uni(keys[8], (256, 4 * 128), b)
    params["w3h_t"] = uni(keys[9], (128, 4 * 128), b)
    params["b3"] = (uni(keys[10], (1, 4 * 128), b) + uni(keys[11], (1, 4 * 128), b))
    # Linear(128, num_beams)
    b = 1.0 / jnp.sqrt(128.0)
    params["wfc_t"] = uni(keys[12], (128, num_beams), b)
    params["bfc"] = uni(keys[13], (1, num_beams), b)
    return params


@functools.partial(jax.jit, static_argnames=("k",))
def lstm_model_forward(x, params, mask_key, k=4):
    """Replicates LSTMModel.forward. x: (batch, seq, num_beams) float32."""
    B, S, N = x.shape
    B_pad = max(8, ((B + 7) // 8) * 8)        # sublane-align batch
    N_pad = max(128, ((N + 127) // 128) * 128)  # lane-align beams

    # Initial random mask: k random beam indices (same across batch), as in
    # the reference's torch.randperm.
    perm = jax.random.permutation(mask_key, N)[:k]
    mask = jnp.zeros((B, N), jnp.float32).at[:, perm].set(1.0)
    mask_p = jnp.zeros((B_pad, N_pad), jnp.float32).at[:B, :N].set(mask)

    # Time-major, zero-padded input: (seq, B_pad, N_pad).
    x_tm = jnp.swapaxes(x, 0, 1)
    x_p = jnp.zeros((S, B_pad, N_pad), jnp.float32).at[:, :B, :N].set(x_tm)

    # Stacked (and lane/row padded) weights: one matmul per LSTM cell.
    w1i_p = jnp.zeros((N_pad, 4 * 128), jnp.float32).at[:N, :].set(params["w1i_t"])
    w1 = jnp.concatenate([w1i_p, params["w1h_t"]], axis=0)            # (N_pad+128, 512)
    w2 = jnp.concatenate([params["w2i_t"], params["w2h_t"]], axis=0)  # (384, 1024)
    w3 = jnp.concatenate([params["w3i_t"], params["w3h_t"]], axis=0)  # (384, 512)
    wfc_p = jnp.zeros((128, N_pad), jnp.float32).at[:, :N].set(params["wfc_t"])
    bfc_p = jnp.zeros((1, N_pad), jnp.float32).at[:, :N].set(params["bfc"])

    fwd = _make_fused_forward(S, B_pad, N_pad, N, k)
    out_p = fwd(x_p, mask_p,
                w1, params["b1"], w2, params["b2"], w3, params["b3"],
                wfc_p, bfc_p)

    return out_p[:B, :N]


if __name__ == "__main__":
    batch, seq, num_beams, k = 2, 8, 17, 4

    key = jax.random.PRNGKey(0)
    k_x, k_params, k_mask = jax.random.split(key, 3)

    x = jax.random.normal(k_x, (batch, seq, num_beams), jnp.float32)
    params = init_params(k_params, num_beams)

    out = lstm_model_forward(x, params, k_mask, k=k)
    jax.block_until_ready(out)

    assert out.shape == (batch, num_beams)
    assert bool(jnp.all(out >= 0.0))  # ReLU output
    print("KERNEL_OK")
</pallas_src>

<mosaic_0001>
module attributes {stable_mosaic.version = 11 : i64} {
  func.func @_fused_kernel(%arg0: i32, %arg1: memref<1x8x128xf32, #tpu.memory_space<vmem>>, %arg2: memref<8x128xf32, #tpu.memory_space<vmem>>, %arg3: memref<256x512xf32, #tpu.memory_space<vmem>>, %arg4: memref<1x512xf32, #tpu.memory_space<vmem>>, %arg5: memref<384x1024xf32, #tpu.memory_space<vmem>>, %arg6: memref<1x1024xf32, #tpu.memory_space<vmem>>, %arg7: memref<384x512xf32, #tpu.memory_space<vmem>>, %arg8: memref<1x512xf32, #tpu.memory_space<vmem>>, %arg9: memref<128x128xf32, #tpu.memory_space<vmem>>, %arg10: memref<1x128xf32, #tpu.memory_space<vmem>>, %arg11: memref<8x128xf32, #tpu.memory_space<vmem>>, %arg12: memref<8x128xf32, #tpu.memory_space<vmem>>, %arg13: memref<8x128xf32, #tpu.memory_space<vmem>>, %arg14: memref<8x128xf32, #tpu.memory_space<vmem>>, %arg15: memref<8x256xf32, #tpu.memory_space<vmem>>, %arg16: memref<8x256xf32, #tpu.memory_space<vmem>>, %arg17: memref<8x128xf32, #tpu.memory_space<vmem>>, %arg18: memref<8x128xf32, #tpu.memory_space<vmem>>) attributes {dimension_semantics = [#tpu.dimension_semantics<arbitrary>], iteration_bounds = array<i64: 8>, scalar_prefetch = 0 : i64, scratch_operands = 7 : i64, tpu.core_type = #tpu.core_type<tc>, window_params = [{transform_indices = @transform_0, window_bounds = array<i64: 1, 8, 128>}, {pipeline_mode = #tpu.pipeline_mode<synchronous>, transform_indices = @transform_1, window_bounds = array<i64: 8, 128>}, {pipeline_mode = #tpu.pipeline_mode<synchronous>, transform_indices = @transform_2, window_bounds = array<i64: 256, 512>}, {pipeline_mode = #tpu.pipeline_mode<synchronous>, transform_indices = @transform_3, window_bounds = array<i64: 1, 512>}, {pipeline_mode = #tpu.pipeline_mode<synchronous>, transform_indices = @transform_4, window_bounds = array<i64: 384, 1024>}, {pipeline_mode = #tpu.pipeline_mode<synchronous>, transform_indices = @transform_5, window_bounds = array<i64: 1, 1024>}, {pipeline_mode = #tpu.pipeline_mode<synchronous>, transform_indices = @transform_6, window_bounds = array<i64: 384, 512>}, {pipeline_mode = #tpu.pipeline_mode<synchronous>, transform_indices = @transform_7, window_bounds = array<i64: 1, 512>}, {pipeline_mode = #tpu.pipeline_mode<synchronous>, transform_indices = @transform_8, window_bounds = array<i64: 128, 128>}, {pipeline_mode = #tpu.pipeline_mode<synchronous>, transform_indices = @transform_9, window_bounds = array<i64: 1, 128>}, {pipeline_mode = #tpu.pipeline_mode<synchronous>, transform_indices = @transform_10, window_bounds = array<i64: 8, 128>}]} {
    %c0_i32 = arith.constant 0 : i32
    %0 = arith.cmpi eq, %arg0, %c0_i32 : i32
    %1 = arith.extui %0 : i1 to i32
    %c0_i32_0 = arith.constant 0 : i32
    %2 = arith.cmpi ne, %1, %c0_i32_0 : i32
    scf.if %2 {
      %c0_90 = arith.constant 0 : index
      %c0_91 = arith.constant 0 : index
      %229 = vector.load %arg2[%c0_90, %c0_91] : memref<8x128xf32, #tpu.memory_space<vmem>>, vector<8x128xf32>
      %c0_92 = arith.constant 0 : index
      %c0_93 = arith.constant 0 : index
      %230 = vector.load %arg12[%c0_92, %c0_93] : memref<8x128xf32, #tpu.memory_space<vmem>>, vector<8x128xf32>
      tpu.vector_store %arg12[%c0_92, %c0_93], %229 {strides = array<i32>} : memref<8x128xf32, #tpu.memory_space<vmem>>, vector<8x128xf32>,
      %cst_94 = arith.constant 0.000000e+00 : f32
      %231 = vector.broadcast %cst_94 : f32 to vector<8x128xf32>
      %c0_95 = arith.constant 0 : index
      %c0_96 = arith.constant 0 : index
      %232 = vector.load %arg13[%c0_95, %c0_96] : memref<8x128xf32, #tpu.memory_space<vmem>>, vector<8x128xf32>
      tpu.vector_store %arg13[%c0_95, %c0_96], %231 {strides = array<i32>} : memref<8x128xf32, #tpu.memory_space<vmem>>, vector<8x128xf32>,
      %cst_97 = arith.constant 0.000000e+00 : f32
      %233 = vector.broadcast %cst_97 : f32 to vector<8x128xf32>
      %c0_98 = arith.constant 0 : index
      %c0_99 = arith.constant 0 : index
      %234 = vector.load %arg14[%c0_98, %c0_99] : memref<8x128xf32, #tpu.memory_space<vmem>>, vector<8x128xf32>
      tpu.vector_store %arg14[%c0_98, %c0_99], %233 {strides = array<i32>} : memref<8x128xf32, #tpu.memory_space<vmem>>, vector<8x128xf32>,
      %cst_100 = arith.constant 0.000000e+00 : f32
      %235 = vector.broadcast %cst_100 : f32 to vector<8x256xf32>
      %c0_101 = arith.constant 0 : index
      %c0_102 = arith.constant 0 : index
      %236 = vector.load %arg15[%c0_101, %c0_102] : memref<8x256xf32, #tpu.memory_space<vmem>>, vector<8x256xf32>
      tpu.vector_store %arg15[%c0_101, %c0_102], %235 {strides = array<i32>} : memref<8x256xf32, #tpu.memory_space<vmem>>, vector<8x256xf32>,
      %cst_103 = arith.constant 0.000000e+00 : f32
      %237 = vector.broadcast %cst_103 : f32 to vector<8x256xf32>
      %c0_104 = arith.constant 0 : index
      %c0_105 = arith.constant 0 : index
      %238 = vector.load %arg16[%c0_104, %c0_105] : memref<8x256xf32, #tpu.memory_space<vmem>>, vector<8x256xf32>
      tpu.vector_store %arg16[%c0_104, %c0_105], %237 {strides = array<i32>} : memref<8x256xf32, #tpu.memory_space<vmem>>, vector<8x256xf32>,
      %cst_106 = arith.constant 0.000000e+00 : f32
      %239 = vector.broadcast %cst_106 : f32 to vector<8x128xf32>
      %c0_107 = arith.constant 0 : index
      %c0_108 = arith.constant 0 : index
      %240 = vector.load %arg17[%c0_107, %c0_108] : memref<8x128xf32, #tpu.memory_space<vmem>>, vector<8x128xf32>
      tpu.vector_store %arg17[%c0_107, %c0_108], %239 {strides = array<i32>} : memref<8x128xf32, #tpu.memory_space<vmem>>, vector<8x128xf32>,
      %cst_109 = arith.constant 0.000000e+00 : f32
      %241 = vector.broadcast %cst_109 : f32 to vector<8x128xf32>
      %c0_110 = arith.constant 0 : index
      %c0_111 = arith.constant 0 : index
      %242 = vector.load %arg18[%c0_110, %c0_111] : memref<8x128xf32, #tpu.memory_space<vmem>>, vector<8x128xf32>
      tpu.vector_store %arg18[%c0_110, %c0_111], %241 {strides = array<i32>} : memref<8x128xf32, #tpu.memory_space<vmem>>, vector<8x128xf32>,
    } else {
    }
    %c0 = arith.constant 0 : index
    %c0_1 = arith.constant 0 : index
    %c0_2 = arith.constant 0 : index
    %3 = vector.load %arg1[%c0, %c0_1, %c0_2] : memref<1x8x128xf32, #tpu.memory_space<vmem>>, vector<1x8x128xf32>
    %4 = vector.shape_cast %3 : vector<1x8x128xf32> to vector<8x128xf32>
    %c0_3 = arith.constant 0 : index
    %c0_4 = arith.constant 0 : index
    %5 = vector.load %arg12[%c0_3, %c0_4] : memref<8x128xf32, #tpu.memory_space<vmem>>, vector<8x128xf32>
    %6 = arith.mulf %4, %5 : vector<8x128xf32>
    %c0_5 = arith.constant 0 : index
    %c0_6 = arith.constant 0 : index
    %7 = vector.load %arg13[%c0_5, %c0_6] : memref<8x128xf32, #tpu.memory_space<vmem>>, vector<8x128xf32>
    %c0_7 = arith.constant 0 : index
    %c0_8 = arith.constant 0 : index
    %8 = vector.load %arg14[%c0_7, %c0_8] : memref<8x128xf32, #tpu.memory_space<vmem>>, vector<8x128xf32>
    %c0_9 = arith.constant 0 : index
    %c0_10 = arith.constant 0 : index
    %9 = vector.load %arg3[%c0_9, %c0_10] : memref<256x512xf32, #tpu.memory_space<vmem>>, vector<256x512xf32>
    %c0_11 = arith.constant 0 : index
    %c0_12 = arith.constant 0 : index
    %10 = vector.load %arg4[%c0_11, %c0_12] : memref<1x512xf32, #tpu.memory_space<vmem>>, vector<1x512xf32>
    %11 = tpu.concatenate %6, %7 in 1 : vector<8x128xf32>, vector<8x128xf32> -> vector<8x256xf32>
    %cst = arith.constant dense<0.000000e+00> : vector<8x512xf32>
    %12 = tpu.matmul %11, %9, %cst {dimension_numbers = #tpu.dot_dimension_numbers<[1], [0], [0], [1], [0, 0, 1, 1], [], []>} : vector<8x256xf32>, vector<256x512xf32>, vector<8x512xf32> -> vector<8x512xf32>
    %13 = vector.broadcast %10 : vector<1x512xf32> to vector<8x512xf32>
    %14 = arith.addf %12, %13 : vector<8x512xf32>
    %15 = vector.extract_strided_slice %14 {offsets = [0, 0], sizes = [8, 128], strides = [1, 1]} : vector<8x512xf32> to vector<8x128xf32>
    %cst_13 = arith.constant 0.000000e+00 : f32
    %16 = vector.broadcast %cst_13 : f32 to vector<8x128xf32>
    %17 = arith.subf %16, %15 : vector<8x128xf32>
    %18 = math.exp %17 : vector<8x128xf32>
    %cst_14 = arith.constant 1.000000e+00 : f32
    %19 = vector.broadcast %cst_14 : f32 to vector<8x128xf32>
    %20 = arith.addf %19, %18 : vector<8x128xf32>
    %21 = tpu.reciprocal %20 {approx = true} : vector<8x128xf32> -> vector<8x128xf32>
    %22 = vector.extract_strided_slice %14 {offsets = [0, 128], sizes = [8, 128], strides = [1, 1]} : vector<8x512xf32> to vector<8x128xf32>
    %cst_15 = arith.constant 0.000000e+00 : f32
    %23 = vector.broadcast %cst_15 : f32 to vector<8x128xf32>
    %24 = arith.subf %23, %22 : vector<8x128xf32>
    %25 = math.exp %24 : vector<8x128xf32>
    %cst_16 = arith.constant 1.000000e+00 : f32
    %26 = vector.broadcast %cst_16 : f32 to vector<8x128xf32>
    %27 = arith.addf %26, %25 : vector<8x128xf32>
    %28 = tpu.reciprocal %27 {approx = true} : vector<8x128xf32> -> vector<8x128xf32>
    %29 = vector.extract_strided_slice %14 {offsets = [0, 256], sizes = [8, 128], strides = [1, 1]} : vector<8x512xf32> to vector<8x128xf32>
    %30 = math.tanh %29 : vector<8x128xf32>
    %31 = vector.extract_strided_slice %14 {offsets = [0, 384], sizes = [8, 128], strides = [1, 1]} : vector<8x512xf32> to vector<8x128xf32>
    %cst_17 = arith.constant 0.000000e+00 : f32
    %32 = vector.broadcast %cst_17 : f32 to vector<8x128xf32>
    %33 = arith.subf %32, %31 : vector<8x128xf32>
    %34 = math.exp %33 : vector<8x128xf32>
    %cst_18 = arith.constant 1.000000e+00 : f32
    %35 = vector.broadcast %cst_18 : f32 to vector<8x128xf32>
    %36 = arith.addf %35, %34 : vector<8x128xf32>
    %37 = tpu.reciprocal %36 {approx = true} : vector<8x128xf32> -> vector<8x128xf32>
    %38 = arith.mulf %28, %8 : vector<8x128xf32>
    %39 = arith.mulf %21, %30 : vector<8x128xf32>
    %40 = arith.addf %38, %39 : vector<8x128xf32>
    %41 = math.tanh %40 : vector<8x128xf32>
    %42 = arith.mulf %37, %41 : vector<8x128xf32>
    %c0_19 = arith.constant 0 : index
    %c0_20 = arith.constant 0 : index
    %43 = vector.load %arg15[%c0_19, %c0_20] : memref<8x256xf32, #tpu.memory_space<vmem>>, vector<8x256xf32>
    %c0_21 = arith.constant 0 : index
    %c0_22 = arith.constant 0 : index
    %44 = vector.load %arg16[%c0_21, %c0_22] : memref<8x256xf32, #tpu.memory_space<vmem>>, vector<8x256xf32>
    %c0_23 = arith.constant 0 : index
    %c0_24 = arith.constant 0 : index
    %45 = vector.load %arg5[%c0_23, %c0_24] : memref<384x1024xf32, #tpu.memory_space<vmem>>, vector<384x1024xf32>
    %c0_25 = arith.constant 0 : index
    %c0_26 = arith.constant 0 : index
    %46 = vector.load %arg6[%c0_25, %c0_26] : memref<1x1024xf32, #tpu.memory_space<vmem>>, vector<1x1024xf32>
    %47 = tpu.concatenate %42, %43 in 1 : vector<8x128xf32>, vector<8x256xf32> -> vector<8x384xf32>
    %cst_27 = arith.constant dense<0.000000e+00> : vector<8x1024xf32>
    %48 = tpu.matmul %47, %45, %cst_27 {dimension_numbers = #tpu.dot_dimension_numbers<[1], [0], [0], [1], [0, 0, 1, 1], [], []>} : vector<8x384xf32>, vector<384x1024xf32>, vector<8x1024xf32> -> vector<8x1024xf32>
    %49 = vector.broadcast %46 : vector<1x1024xf32> to vector<8x1024xf32>
    %50 = arith.addf %48, %49 : vector<8x1024xf32>
    %51 = vector.extract_strided_slice %50 {offsets = [0, 0], sizes = [8, 256], strides = [1, 1]} : vector<8x1024xf32> to vector<8x256xf32>
    %cst_28 = arith.constant 0.000000e+00 : f32
    %52 = vector.broadcast %cst_28 : f32 to vector<8x256xf32>
    %53 = arith.subf %52, %51 : vector<8x256xf32>
    %54 = math.exp %53 : vector<8x256xf32>
    %cst_29 = arith.constant 1.000000e+00 : f32
    %55 = vector.broadcast %cst_29 : f32 to vector<8x256xf32>
    %56 = arith.addf %55, %54 : vector<8x256xf32>
    %57 = tpu.reciprocal %56 {approx = true} : vector<8x256xf32> -> vector<8x256xf32>
    %58 = vector.extract_strided_slice %50 {offsets = [0, 256], sizes = [8, 256], strides = [1, 1]} : vector<8x1024xf32> to vector<8x256xf32>
    %cst_30 = arith.constant 0.000000e+00 : f32
    %59 = vector.broadcast %cst_30 : f32 to vector<8x256xf32>
    %60 = arith.subf %59, %58 : vector<8x256xf32>
    %61 = math.exp %60 : vector<8x256xf32>
    %cst_31 = arith.constant 1.000000e+00 : f32
    %62 = vector.broadcast %cst_31 : f32 to vector<8x256xf32>
    %63 = arith.addf %62, %61 : vector<8x256xf32>
    %64 = tpu.reciprocal %63 {approx = true} : vector<8x256xf32> -> vector<8x256xf32>
    %65 = vector.extract_strided_slice %50 {offsets = [0, 512], sizes = [8, 256], strides = [1, 1]} : vector<8x1024xf32> to vector<8x256xf32>
    %66 = math.tanh %65 : vector<8x256xf32>
    %67 = vector.extract_strided_slice %50 {offsets = [0, 768], sizes = [8, 256], strides = [1, 1]} : vector<8x1024xf32> to vector<8x256xf32>
    %cst_32 = arith.constant 0.000000e+00 : f32
    %68 = vector.broadcast %cst_32 : f32 to vector<8x256xf32>
    %69 = arith.subf %68, %67 : vector<8x256xf32>
    %70 = math.exp %69 : vector<8x256xf32>
    %cst_33 = arith.constant 1.000000e+00 : f32
    %71 = vector.broadcast %cst_33 : f32 to vector<8x256xf32>
    %72 = arith.addf %71, %70 : vector<8x256xf32>
    %73 = tpu.reciprocal %72 {approx = true} : vector<8x256xf32> -> vector<8x256xf32>
    %74 = arith.mulf %64, %44 : vector<8x256xf32>
    %75 = arith.mulf %57, %66 : vector<8x256xf32>
    %76 = arith.addf %74, %75 : vector<8x256xf32>
    %77 = math.tanh %76 : vector<8x256xf32>
    %78 = arith.mulf %73, %77 : vector<8x256xf32>
    %c0_34 = arith.constant 0 : index
    %c0_35 = arith.constant 0 : index
    %79 = vector.load %arg17[%c0_34, %c0_35] : memref<8x128xf32, #tpu.memory_space<vmem>>, vector<8x128xf32>
    %c0_36 = arith.constant 0 : index
    %c0_37 = arith.constant 0 : index
    %80 = vector.load %arg18[%c0_36, %c0_37] : memref<8x128xf32, #tpu.memory_space<vmem>>, vector<8x128xf32>
    %c0_38 = arith.constant 0 : index
    %c0_39 = arith.constant 0 : index
    %81 = vector.load %arg7[%c0_38, %c0_39] : memref<384x512xf32, #tpu.memory_space<vmem>>, vector<384x512xf32>
    %c0_40 = arith.constant 0 : index
    %c0_41 = arith.constant 0 : index
    %82 = vector.load %arg8[%c0_40, %c0_41] : memref<1x512xf32, #tpu.memory_space<vmem>>, vector<1x512xf32>
    %83 = tpu.concatenate %78, %79 in 1 : vector<8x256xf32>, vector<8x128xf32> -> vector<8x384xf32>
    %cst_42 = arith.constant dense<0.000000e+00> : vector<8x512xf32>
    %84 = tpu.matmul %83, %81, %cst_42 {dimension_numbers = #tpu.dot_dimension_numbers<[1], [0], [0], [1], [0, 0, 1, 1], [], []>} : vector<8x384xf32>, vector<384x512xf32>, vector<8x512xf32> -> vector<8x512xf32>
    %85 = vector.broadcast %82 : vector<1x512xf32> to vector<8x512xf32>
    %86 = arith.addf %84, %85 : vector<8x512xf32>
    %87 = vector.extract_strided_slice %86 {offsets = [0, 0], sizes = [8, 128], strides = [1, 1]} : vector<8x512xf32> to vector<8x128xf32>
    %cst_43 = arith.constant 0.000000e+00 : f32
    %88 = vector.broadcast %cst_43 : f32 to vector<8x128xf32>
    %89 = arith.subf %88, %87 : vector<8x128xf32>
    %90 = math.exp %89 : vector<8x128xf32>
    %cst_44 = arith.constant 1.000000e+00 : f32
    %91 = vector.broadcast %cst_44 : f32 to vector<8x128xf32>
    %92 = arith.addf %91, %90 : vector<8x128xf32>
    %93 = tpu.reciprocal %92 {approx = true} : vector<8x128xf32> -> vector<8x128xf32>
    %94 = vector.extract_strided_slice %86 {offsets = [0, 128], sizes = [8, 128], strides = [1, 1]} : vector<8x512xf32> to vector<8x128xf32>
    %cst_45 = arith.constant 0.000000e+00 : f32
    %95 = vector.broadcast %cst_45 : f32 to vector<8x128xf32>
    %96 = arith.subf %95, %94 : vector<8x128xf32>
    %97 = math.exp %96 : vector<8x128xf32>
    %cst_46 = arith.constant 1.000000e+00 : f32
    %98 = vector.broadcast %cst_46 : f32 to vector<8x128xf32>
    %99 = arith.addf %98, %97 : vector<8x128xf32>
    %100 = tpu.reciprocal %99 {approx = true} : vector<8x128xf32> -> vector<8x128xf32>
    %101 = vector.extract_strided_slice %86 {offsets = [0, 256], sizes = [8, 128], strides = [1, 1]} : vector<8x512xf32> to vector<8x128xf32>
    %102 = math.tanh %101 : vector<8x128xf32>
    %103 = vector.extract_strided_slice %86 {offsets = [0, 384], sizes = [8, 128], strides = [1, 1]} : vector<8x512xf32> to vector<8x128xf32>
    %cst_47 = arith.constant 0.000000e+00 : f32
    %104 = vector.broadcast %cst_47 : f32 to vector<8x128xf32>
    %105 = arith.subf %104, %103 : vector<8x128xf32>
    %106 = math.exp %105 : vector<8x128xf32>
    %cst_48 = arith.constant 1.000000e+00 : f32
    %107 = vector.broadcast %cst_48 : f32 to vector<8x128xf32>
    %108 = arith.addf %107, %106 : vector<8x128xf32>
    %109 = tpu.reciprocal %108 {approx = true} : vector<8x128xf32> -> vector<8x128xf32>
    %110 = arith.mulf %100, %80 : vector<8x128xf32>
    %111 = arith.mulf %93, %102 : vector<8x128xf32>
    %112 = arith.addf %110, %111 : vector<8x128xf32>
    %113 = math.tanh %112 : vector<8x128xf32>
    %114 = arith.mulf %109, %113 : vector<8x128xf32>
    %c0_49 = arith.constant 0 : index
    %c0_50 = arith.constant 0 : index
    %115 = vector.load %arg13[%c0_49, %c0_50] : memref<8x128xf32, #tpu.memory_space<vmem>>, vector<8x128xf32>
    tpu.vector_store %arg13[%c0_49, %c0_50], %42 {strides = array<i32>} : memref<8x128xf32, #tpu.memory_space<vmem>>, vector<8x128xf32>,
    %c0_51 = arith.constant 0 : index
    %c0_52 = arith.constant 0 : index
    %116 = vector.load %arg14[%c0_51, %c0_52] : memref<8x128xf32, #tpu.memory_space<vmem>>, vector<8x128xf32>
    tpu.vector_store %arg14[%c0_51, %c0_52], %40 {strides = array<i32>} : memref<8x128xf32, #tpu.memory_space<vmem>>, vector<8x128xf32>,
    %c0_53 = arith.constant 0 : index
    %c0_54 = arith.constant 0 : index
    %117 = vector.load %arg15[%c0_53, %c0_54] : memref<8x256xf32, #tpu.memory_space<vmem>>, vector<8x256xf32>
    tpu.vector_store %arg15[%c0_53, %c0_54], %78 {strides = array<i32>} : memref<8x256xf32, #tpu.memory_space<vmem>>, vector<8x256xf32>,
    %c0_55 = arith.constant 0 : index
    %c0_56 = arith.constant 0 : index
    %118 = vector.load %arg16[%c0_55, %c0_56] : memref<8x256xf32, #tpu.memory_space<vmem>>, vector<8x256xf32>
    tpu.vector_store %arg16[%c0_55, %c0_56], %76 {strides = array<i32>} : memref<8x256xf32, #tpu.memory_space<vmem>>, vector<8x256xf32>,
    %c0_57 = arith.constant 0 : index
    %c0_58 = arith.constant 0 : index
    %119 = vector.load %arg17[%c0_57, %c0_58] : memref<8x128xf32, #tpu.memory_space<vmem>>, vector<8x128xf32>
    tpu.vector_store %arg17[%c0_57, %c0_58], %114 {strides = array<i32>} : memref<8x128xf32, #tpu.memory_space<vmem>>, vector<8x128xf32>,
    %c0_59 = arith.constant 0 : index
    %c0_60 = arith.constant 0 : index
    %120 = vector.load %arg18[%c0_59, %c0_60] : memref<8x128xf32, #tpu.memory_space<vmem>>, vector<8x128xf32>
    tpu.vector_store %arg18[%c0_59, %c0_60], %112 {strides = array<i32>} : memref<8x128xf32, #tpu.memory_space<vmem>>, vector<8x128xf32>,
    %c0_61 = arith.constant 0 : index
    %c0_62 = arith.constant 0 : index
    %121 = vector.load %arg9[%c0_61, %c0_62] : memref<128x128xf32, #tpu.memory_space<vmem>>, vector<128x128xf32>
    %cst_63 = arith.constant dense<0.000000e+00> : vector<8x128xf32>
    %122 = tpu.matmul %114, %121, %cst_63 {dimension_numbers = #tpu.dot_dimension_numbers<[1], [0], [0], [1], [0, 0, 1, 1], [], []>} : vector<8x128xf32>, vector<128x128xf32>, vector<8x128xf32> -> vector<8x128xf32>
    %c0_64 = arith.constant 0 : index
    %c0_65 = arith.constant 0 : index
    %123 = vector.load %arg10[%c0_64, %c0_65] : memref<1x128xf32, #tpu.memory_space<vmem>>, vector<1x128xf32>
    %124 = vector.broadcast %123 : vector<1x128xf32> to vector<8x128xf32>
    %125 = arith.addf %122, %124 : vector<8x128xf32>
    %cst_66 = arith.constant 0.000000e+00 : f32
    %126 = vector.broadcast %cst_66 : f32 to vector<8x128xf32>
    %127 = arith.maximumf %125, %126 : vector<8x128xf32>
    %c0_67 = arith.constant 0 : index
    %c0_68 = arith.constant 0 : index
    %128 = vector.load %arg11[%c0_67, %c0_68] : memref<8x128xf32, #tpu.memory_space<vmem>>, vector<8x128xf32>
    tpu.vector_store %arg11[%c0_67, %c0_68], %127 {strides = array<i32>} : memref<8x128xf32, #tpu.memory_space<vmem>>, vector<8x128xf32>,
    %129 = tpu.iota {dimensions = array<i32: 1>} : vector<8x128xi32>
    %130 = arith.sitofp %129 : vector<8x128xi32> to vector<8x128xf32>
    %c17_i32 = arith.constant 17 : i32
    %131 = vector.broadcast %c17_i32 : i32 to vector<8x128xi32>
    %132 = arith.cmpi slt, %129, %131 : vector<8x128xi32>
    %cst_69 = arith.constant 0x7F800000 : f32
    %133 = vector.broadcast %cst_69 : f32 to vector<8x128xf32>
    %134 = arith.select %132, %127, %133 : vector<8x128xi1>, vector<8x128xf32>
    %cst_70 = arith.constant 0.000000e+00 : f32
    %135 = vector.broadcast %cst_70 : f32 to vector<8x128xf32>
    %c0_i32_71 = arith.constant 0 : i32
    %136 = vector.broadcast %c0_i32_71 : i32 to vector<8x128xi32>
    %137 = arith.cmpi eq, %129, %136 : vector<8x128xi32>
    %cst_72 = arith.constant 0.000000e+00 : f32
    %138 = vector.broadcast %cst_72 : f32 to vector<8x128xf32>
    %139 = arith.select %137, %134, %138 : vector<8x128xi1>, vector<8x128xf32>
    %cst_73 = arith.constant dense<0.000000e+00> : vector<8xf32>
    %140 = vector.multi_reduction <add>, %139, %cst_73 [1] : vector<8x128xf32> to vector<8xf32>
    %141 = vector.shape_cast %140 : vector<8xf32> to vector<8x1xf32>
    %142 = vector.broadcast %141 : vector<8x1xf32> to vector<8x128xf32>
    %143 = arith.cmpf olt, %134, %142 : vector<8x128xf32>
    %144 = vector.broadcast %141 : vector<8x1xf32> to vector<8x128xf32>
    %145 = arith.cmpf oeq, %134, %144 : vector<8x128xf32>
    %c0_i32_74 = arith.constant 0 : i32
    %146 = vector.broadcast %c0_i32_74 : i32 to vector<8x128xi32>
    %147 = arith.cmpi slt, %129, %146 : vector<8x128xi32>
    %148 = arith.andi %145, %147 : vector<8x128xi1>
    %149 = arith.ori %143, %148 : vector<8x128xi1>
    %150 = arith.extui %149 : vector<8x128xi1> to vector<8x128xi32>
    %151 = arith.sitofp %150 : vector<8x128xi32> to vector<8x128xf32>
    %cst_75 = arith.constant dense<0.000000e+00> : vector<8xf32>
    %152 = vector.multi_reduction <add>, %151, %cst_75 [1] : vector<8x128xf32> to vector<8xf32>
    %153 = vector.shape_cast %152 : vector<8xf32> to vector<8x1xf32>
    %154 = vector.broadcast %153 : vector<8x1xf32> to vector<8x128xf32>
    %155 = arith.cmpf oeq, %130, %154 : vector<8x128xf32>
    %156 = arith.extui %155 : vector<8x128xi1> to vector<8x128xi32>
    %157 = arith.sitofp %156 : vector<8x128xi32> to vector<8x128xf32>
    %158 = arith.addf %135, %157 : vector<8x128xf32>
    %c1_i32 = arith.constant 1 : i32
    %159 = vector.broadcast %c1_i32 : i32 to vector<8x128xi32>
    %160 = arith.cmpi eq, %129, %159 : vector<8x128xi32>
    %cst_76 = arith.constant 0.000000e+00 : f32
    %161 = vector.broadcast %cst_76 : f32 to vector<8x128xf32>
    %162 = arith.select %160, %134, %161 : vector<8x128xi1>, vector<8x128xf32>
    %cst_77 = arith.constant dense<0.000000e+00> : vector<8xf32>
    %163 = vector.multi_reduction <add>, %162, %cst_77 [1] : vector<8x128xf32> to vector<8xf32>
    %164 = vector.shape_cast %163 : vector<8xf32> to vector<8x1xf32>
    %165 = vector.broadcast %164 : vector<8x1xf32> to vector<8x128xf32>
    %166 = arith.cmpf olt, %134, %165 : vector<8x128xf32>
    %167 = vector.broadcast %164 : vector<8x1xf32> to vector<8x128xf32>
    %168 = arith.cmpf oeq, %134, %167 : vector<8x128xf32>
    %c1_i32_78 = arith.constant 1 : i32
    %169 = vector.broadcast %c1_i32_78 : i32 to vector<8x128xi32>
    %170 = arith.cmpi slt, %129, %169 : vector<8x128xi32>
    %171 = arith.andi %168, %170 : vector<8x128xi1>
    %172 = arith.ori %166, %171 : vector<8x128xi1>
    %173 = arith.extui %172 : vector<8x128xi1> to vector<8x128xi32>
    %174 = arith.sitofp %173 : vector<8x128xi32> to vector<8x128xf32>
    %cst_79 = arith.constant dense<0.000000e+00> : vector<8xf32>
    %175 = vector.multi_reduction <add>, %174, %cst_79 [1] : vector<8x128xf32> to vector<8xf32>
    %176 = vector.shape_cast %175 : vector<8xf32> to vector<8x1xf32>
    %177 = vector.broadcast %176 : vector<8x1xf32> to vector<8x128xf32>
    %178 = arith.cmpf oeq, %130, %177 : vector<8x128xf32>
    %179 = arith.extui %178 : vector<8x128xi1> to vector<8x128xi32>
    %180 = arith.sitofp %179 : vector<8x128xi32> to vector<8x128xf32>
    %181 = arith.addf %158, %180 : vector<8x128xf32>
    %c2_i32 = arith.constant 2 : i32
    %182 = vector.broadcast %c2_i32 : i32 to vector<8x128xi32>
    %183 = arith.cmpi eq, %129, %182 : vector<8x128xi32>
    %cst_80 = arith.constant 0.000000e+00 : f32
    %184 = vector.broadcast %cst_80 : f32 to vector<8x128xf32>
    %185 = arith.select %183, %134, %184 : vector<8x128xi1>, vector<8x128xf32>
    %cst_81 = arith.constant dense<0.000000e+00> : vector<8xf32>
    %186 = vector.multi_reduction <add>, %185, %cst_81 [1] : vector<8x128xf32> to vector<8xf32>
    %187 = vector.shape_cast %186 : vector<8xf32> to vector<8x1xf32>
    %188 = vector.broadcast %187 : vector<8x1xf32> to vector<8x128xf32>
    %189 = arith.cmpf olt, %134, %188 : vector<8x128xf32>
    %190 = vector.broadcast %187 : vector<8x1xf32> to vector<8x128xf32>
    %191 = arith.cmpf oeq, %134, %190 : vector<8x128xf32>
    %c2_i32_82 = arith.constant 2 : i32
    %192 = vector.broadcast %c2_i32_82 : i32 to vector<8x128xi32>
    %193 = arith.cmpi slt, %129, %192 : vector<8x128xi32>
    %194 = arith.andi %191, %193 : vector<8x128xi1>
    %195 = arith.ori %189, %194 : vector<8x128xi1>
    %196 = arith.extui %195 : vector<8x128xi1> to vector<8x128xi32>
    %197 = arith.sitofp %196 : vector<8x128xi32> to vector<8x128xf32>
    %cst_83 = arith.constant dense<0.000000e+00> : vector<8xf32>
    %198 = vector.multi_reduction <add>, %197, %cst_83 [1] : vector<8x128xf32> to vector<8xf32>
    %199 = vector.shape_cast %198 : vector<8xf32> to vector<8x1xf32>
    %200 = vector.broadcast %199 : vector<8x1xf32> to vector<8x128xf32>
    %201 = arith.cmpf oeq, %130, %200 : vector<8x128xf32>
    %202 = arith.extui %201 : vector<8x128xi1> to vector<8x128xi32>
    %203 = arith.sitofp %202 : vector<8x128xi32> to vector<8x128xf32>
    %204 = arith.addf %181, %203 : vector<8x128xf32>
    %c3_i32 = arith.constant 3 : i32
    %205 = vector.broadcast %c3_i32 : i32 to vector<8x128xi32>
    %206 = arith.cmpi eq, %129, %205 : vector<8x128xi32>
    %cst_84 = arith.constant 0.000000e+00 : f32
    %207 = vector.broadcast %cst_84 : f32 to vector<8x128xf32>
    %208 = arith.select %206, %134, %207 : vector<8x128xi1>, vector<8x128xf32>
    %cst_85 = arith.constant dense<0.000000e+00> : vector<8xf32>
    %209 = vector.multi_reduction <add>, %208, %cst_85 [1] : vector<8x128xf32> to vector<8xf32>
    %210 = vector.shape_cast %209 : vector<8xf32> to vector<8x1xf32>
    %211 = vector.broadcast %210 : vector<8x1xf32> to vector<8x128xf32>
    %212 = arith.cmpf olt, %134, %211 : vector<8x128xf32>
    %213 = vector.broadcast %210 : vector<8x1xf32> to vector<8x128xf32>
    %214 = arith.cmpf oeq, %134, %213 : vector<8x128xf32>
    %c3_i32_86 = arith.constant 3 : i32
    %215 = vector.broadcast %c3_i32_86 : i32 to vector<8x128xi32>
    %216 = arith.cmpi slt, %129, %215 : vector<8x128xi32>
    %217 = arith.andi %214, %216 : vector<8x128xi1>
    %218 = arith.ori %212, %217 : vector<8x128xi1>
    %219 = arith.extui %218 : vector<8x128xi1> to vector<8x128xi32>
    %220 = arith.sitofp %219 : vector<8x128xi32> to vector<8x128xf32>
    %cst_87 = arith.constant dense<0.000000e+00> : vector<8xf32>
    %221 = vector.multi_reduction <add>, %220, %cst_87 [1] : vector<8x128xf32> to vector<8xf32>
    %222 = vector.shape_cast %221 : vector<8xf32> to vector<8x1xf32>
    %223 = vector.broadcast %222 : vector<8x1xf32> to vector<8x128xf32>
    %224 = arith.cmpf oeq, %130, %223 : vector<8x128xf32>
    %225 = arith.extui %224 : vector<8x128xi1> to vector<8x128xi32>
    %226 = arith.sitofp %225 : vector<8x128xi32> to vector<8x128xf32>
    %227 = arith.addf %204, %226 : vector<8x128xf32>
    %c0_88 = arith.constant 0 : index
    %c0_89 = arith.constant 0 : index
    %228 = vector.load %arg12[%c0_88, %c0_89] : memref<8x128xf32, #tpu.memory_space<vmem>>, vector<8x128xf32>
    tpu.vector_store %arg12[%c0_88, %c0_89], %227 {strides = array<i32>} : memref<8x128xf32, #tpu.memory_space<vmem>>, vector<8x128xf32>,
    return
  }
  func.func @transform_0(%arg0: i32) -> (i32, i32, i32) {
    %c0_i32 = arith.constant 0 : i32
    %c0_i32_0 = arith.constant 0 : i32
    %c0_i32_1 = arith.constant 0 : i32
    return %arg0, %c0_i32, %c0_i32_0 : i32, i32, i32
  }
  func.func @transform_1(%arg0: i32) -> (i32, i32) {
    %c0_i32 = arith.constant 0 : i32
    %c0_i32_0 = arith.constant 0 : i32
    %c0_i32_1 = arith.constant 0 : i32
    return %c0_i32, %c0_i32_0 : i32, i32
  }
  func.func @transform_2(%arg0: i32) -> (i32, i32) {
    %c0_i32 = arith.constant 0 : i32
    %c0_i32_0 = arith.constant 0 : i32
    %c0_i32_1 = arith.constant 0 : i32
    return %c0_i32, %c0_i32_0 : i32, i32
  }
  func.func @transform_3(%arg0: i32) -> (i32, i32) {
    %c0_i32 = arith.constant 0 : i32
    %c0_i32_0 = arith.constant 0 : i32
    %c0_i32_1 = arith.constant 0 : i32
    return %c0_i32, %c0_i32_0 : i32, i32
  }
  func.func @transform_4(%arg0: i32) -> (i32, i32) {
    %c0_i32 = arith.constant 0 : i32
    %c0_i32_0 = arith.constant 0 : i32
    %c0_i32_1 = arith.constant 0 : i32
    return %c0_i32, %c0_i32_0 : i32, i32
  }
  func.func @transform_5(%arg0: i32) -> (i32, i32) {
    %c0_i32 = arith.constant 0 : i32
    %c0_i32_0 = arith.constant 0 : i32
    %c0_i32_1 = arith.constant 0 : i32
    return %c0_i32, %c0_i32_0 : i32, i32
  }
  func.func @transform_6(%arg0: i32) -> (i32, i32) {
    %c0_i32 = arith.constant 0 : i32
    %c0_i32_0 = arith.constant 0 : i32
    %c0_i32_1 = arith.constant 0 : i32
    return %c0_i32, %c0_i32_0 : i32, i32
  }
  func.func @transform_7(%arg0: i32) -> (i32, i32) {
    %c0_i32 = arith.constant 0 : i32
    %c0_i32_0 = arith.constant 0 : i32
    %c0_i32_1 = arith.constant 0 : i32
    return %c0_i32, %c0_i32_0 : i32, i32
  }
  func.func @transform_8(%arg0: i32) -> (i32, i32) {
    %c0_i32 = arith.constant 0 : i32
    %c0_i32_0 = arith.constant 0 : i32
    %c0_i32_1 = arith.constant 0 : i32
    return %c0_i32, %c0_i32_0 : i32, i32
  }
  func.func @transform_9(%arg0: i32) -> (i32, i32) {
    %c0_i32 = arith.constant 0 : i32
    %c0_i32_0 = arith.constant 0 : i32
    %c0_i32_1 = arith.constant 0 : i32
    return %c0_i32, %c0_i32_0 : i32, i32
  }
  func.func @transform_10(%arg0: i32) -> (i32, i32) {
    %c0_i32 = arith.constant 0 : i32
    %c0_i32_0 = arith.constant 0 : i32
    %c0_i32_1 = arith.constant 0 : i32
    return %c0_i32, %c0_i32_0 : i32, i32
  }
}

</mosaic_0001>

<llo_original>
// kernel: lstm_model_forward.1
$region0: #{lstm_model_forward.1}
  #allocation0 [shape = 'u32[]', space=smem, size = 0x4, offset = 0x4, fixed_abs, tag = 'smem constant byte address 0x4 - core index']
  #allocation1 [shape = 'u32[72,128]{1,0:T(1,128)}', space=vmem, size = 0x9000, scoped, tag = 'internal scratch']
  #allocation2 [shape = 'f32[8,128]{1,0:T(8,128)}', space=vmem, size = 0x1000, scoped, tag = 'scratch operand']
  #allocation3 [shape = 'f32[8,128]{1,0:T(8,128)}', space=vmem, size = 0x1000, scoped, tag = 'scratch operand']
  #allocation4 [shape = 'f32[8,128]{1,0:T(8,128)}', space=vmem, size = 0x1000, scoped, tag = 'scratch operand']
  #allocation5 [shape = 'f32[8,256]{1,0:T(8,128)}', space=vmem, size = 0x2000, scoped, tag = 'scratch operand']
  #allocation6 [shape = 'f32[8,256]{1,0:T(8,128)}', space=vmem, size = 0x2000, scoped, tag = 'scratch operand']
  #allocation7 [shape = 'f32[8,128]{1,0:T(8,128)}', space=vmem, size = 0x1000, scoped, tag = 'scratch operand']
  #allocation8 [shape = 'f32[8,128]{1,0:T(8,128)}', space=vmem, size = 0x1000, scoped, tag = 'scratch operand']
  %s0 = inlined_call_operand.vmem [shape: f32[8,8,128], index: 0, kind: input, shape index: {}]
  %s1 = inlined_call_operand.vmem [shape: f32[8,128], index: 1, kind: input, shape index: {}]
  %s2 = inlined_call_operand.vmem [shape: f32[256,512], index: 2, kind: input, shape index: {}]
  %s3 = inlined_call_operand.vmem [shape: f32[1,512], index: 3, kind: input, shape index: {}]
  %s4 = inlined_call_operand.vmem [shape: f32[384,1024], index: 4, kind: input, shape index: {}]
  %s5 = inlined_call_operand.vmem [shape: f32[1,1024], index: 5, kind: input, shape index: {}]
  %s6 = inlined_call_operand.vmem [shape: f32[384,512], index: 6, kind: input, shape index: {}]
  %s7 = inlined_call_operand.vmem [shape: f32[1,512], index: 7, kind: input, shape index: {}]
  %s8 = inlined_call_operand.vmem [shape: f32[128,128], index: 8, kind: input, shape index: {}]
  %s9 = inlined_call_operand.vmem [shape: f32[1,128], index: 9, kind: input, shape index: {}]
  %s10 = inlined_call_operand.vmem [shape: f32[8,128], index: 10, kind: output, shape index: {}]
  %s11 = sld [smem:[#allocation0]]
  $region77: #{lstm_model_forward.1} parent=0
    _
  %s13 = ssub.s32 1, %s11
  %s14 = scalar_select 0, %s13, %s11
  loop: start=0, step=1, limit=10
  $region2: #{lstm_model_forward.1} parent=0 // loop_pre_header
    _
  $region3: #{lstm_model_forward.1} parent=0 // loop_header
    %s16 = sphi 0, %s20
    %p17 = scmp.ge.s32.totalorder %s16, 10
    %s26 = sphi 0, %s28
    %s29 = sphi 0, %s26
    %s30 = sphi 0, %s29
    %s46 = sphi 0, %s30
    %s50 = sphi 0, %s50
    %s52 = sphi 0, %s50
    %s53 = sphi 0, %s52
    %s67 = sphi 0, %s53
    %s71 = sphi 0, %s71
    %s73 = sphi 0, %s71
    %s74 = sphi 0, %s73
    %s88 = sphi 0, %s74
    %s92 = sphi 0, %s92
    %s94 = sphi 0, %s92
    %s95 = sphi 0, %s94
    %s109 = sphi 0, %s95
    %s113 = sphi 0, %s113
    %s115 = sphi 0, %s113
    %s116 = sphi 0, %s115
    %s130 = sphi 0, %s116
    %s134 = sphi 0, %s134
    %s136 = sphi 0, %s134
    %s137 = sphi 0, %s136
    %s151 = sphi 0, %s137
    %s155 = sphi 0, %s155
    %s157 = sphi 0, %s155
    %s158 = sphi 0, %s157
    %s172 = sphi 0, %s158
    %s176 = sphi 0, %s176
    %s178 = sphi 0, %s176
    %s179 = sphi 0, %s178
    %s193 = sphi 0, %s179
    %s197 = sphi 0, %s197
    %s199 = sphi 0, %s197
    %s200 = sphi 0, %s199
    %s214 = sphi 0, %s200
    %s218 = sphi 0, %s218
    %s220 = sphi 0, %s218
    %s221 = sphi 0, %s220
    %s235 = sphi 0, %s221
    %s239 = sphi 0, %s239
    %s241 = sphi 0, %s239
    %s242 = sphi 0, %s241
    %s256 = sphi 0, %s242
  $region4: #{lstm_model_forward.1} parent=0 // loop_header_branch
    %19 = sbr.rel (%p17) target = $region8
  $region5: #{lstm_model_forward.1} parent=0 // loop_body
    %s21 = ssub.s32 %s16, 1
    %s22 = ssub.s32 %s16, 2
    %s23 = sadd.s32 %s16, 1
    %s24 = ssub.s32 %s16, %s23
    %p25 = scmp.eq.s32.totalorder %s24, 0
    %s27 = sadd.s32 %s26, 1
    %s28 = scalar_select %p25, %s26, %s27
    %p31 = pneg %p25
    %p32 = scmp.eq.s32.totalorder %s16, 7
    %p33 = por %p31, %p32
    %p34 = scmp.ne.s32.totalorder %s26, %s29
    %p35 = scmp.eq.s32.totalorder %s16, 0
    %p36 = por %p34, %p35
    %p37 = scmp.ne.s32.totalorder %s26, %s29
    %p38 = scmp.eq.s32.totalorder %s21, 7
    %p39 = por %p37, %p38
    %p40 = scmp.ne.s32.totalorder %s29, %s30
    %p41 = scmp.eq.s32.totalorder %s21, 0
    %p42 = por %p40, %p41
    %p43 = scmp.ne.s32.totalorder %s29, %s30
    %p44 = scmp.eq.s32.totalorder %s22, 7
    %p45 = por %p43, %p44
    %p47 = scmp.ne.s32.totalorder %s30, %s46
    %p48 = scmp.eq.s32.totalorder %s22, 0
    %p49 = por %p47, %p48
    %s51 = sadd.s32 %s50, 1
    %p54 = scmp.eq.s32.totalorder %s16, 7
    %p55 = scmp.ne.s32.totalorder %s50, %s52
    %p56 = scmp.eq.s32.totalorder %s16, 0
    %p57 = por %p55, %p56
    %p58 = scmp.ne.s32.totalorder %s50, %s52
    %p59 = scmp.eq.s32.totalorder %s21, 7
    %p60 = por %p58, %p59
    %p61 = scmp.ne.s32.totalorder %s52, %s53
    %p62 = scmp.eq.s32.totalorder %s21, 0
    %p63 = por %p61, %p62
    %p64 = scmp.ne.s32.totalorder %s52, %s53
    %p65 = scmp.eq.s32.totalorder %s22, 7
    %p66 = por %p64, %p65
    %p68 = scmp.ne.s32.totalorder %s53, %s67
    %p69 = scmp.eq.s32.totalorder %s22, 0
    %p70 = por %p68, %p69
    %s72 = sadd.s32 %s71, 1
    %p75 = scmp.eq.s32.totalorder %s16, 7
    %p76 = scmp.ne.s32.totalorder %s71, %s73
    %p77 = scmp.eq.s32.totalorder %s16, 0
    %p78 = por %p76, %p77
    %p79 = scmp.ne.s32.totalorder %s71, %s73
    %p80 = scmp.eq.s32.totalorder %s21, 7
    %p81 = por %p79, %p80
    %p82 = scmp.ne.s32.totalorder %s73, %s74
    %p83 = scmp.eq.s32.totalorder %s21, 0
    %p84 = por %p82, %p83
    %p85 = scmp.ne.s32.totalorder %s73, %s74
    %p86 = scmp.eq.s32.totalorder %s22, 7
    %p87 = por %p85, %p86
    %p89 = scmp.ne.s32.totalorder %s74, %s88
    %p90 = scmp.eq.s32.totalorder %s22, 0
    %p91 = por %p89, %p90
    %s93 = sadd.s32 %s92, 1
    %p96 = scmp.eq.s32.totalorder %s16, 7
    %p97 = scmp.ne.s32.totalorder %s92, %s94
    %p98 = scmp.eq.s32.totalorder %s16, 0
    %p99 = por %p97, %p98
    %p100 = scmp.ne.s32.totalorder %s92, %s94
    %p101 = scmp.eq.s32.totalorder %s21, 7
    %p102 = por %p100, %p101
    %p103 = scmp.ne.s32.totalorder %s94, %s95
    %p104 = scmp.eq.s32.totalorder %s21, 0
    %p105 = por %p103, %p104
    %p106 = scmp.ne.s32.totalorder %s94, %s95
    %p107 = scmp.eq.s32.totalorder %s22, 7
    %p108 = por %p106, %p107
    %p110 = scmp.ne.s32.totalorder %s95, %s109
    %p111 = scmp.eq.s32.totalorder %s22, 0
    %p112 = por %p110, %p111
    %s114 = sadd.s32 %s113, 1
    %p117 = scmp.eq.s32.totalorder %s16, 7
    %p118 = scmp.ne.s32.totalorder %s113, %s115
    %p119 = scmp.eq.s32.totalorder %s16, 0
    %p120 = por %p118, %p119
    %p121 = scmp.ne.s32.totalorder %s113, %s115
    %p122 = scmp.eq.s32.totalorder %s21, 7
    %p123 = por %p121, %p122
    %p124 = scmp.ne.s32.totalorder %s115, %s116
    %p125 = scmp.eq.s32.totalorder %s21, 0
    %p126 = por %p124, %p125
    %p127 = scmp.ne.s32.totalorder %s115, %s116
    %p128 = scmp.eq.s32.totalorder %s22, 7
    %p129 = por %p127, %p128
    %p131 = scmp.ne.s32.totalorder %s116, %s130
    %p132 = scmp.eq.s32.totalorder %s22, 0
    %p133 = por %p131, %p132
    %s135 = sadd.s32 %s134, 1
    %p138 = scmp.eq.s32.totalorder %s16, 7
    %p139 = scmp.ne.s32.totalorder %s134, %s136
    %p140 = scmp.eq.s32.totalorder %s16, 0
    %p141 = por %p139, %p140
    %p142 = scmp.ne.s32.totalorder %s134, %s136
    %p143 = scmp.eq.s32.totalorder %s21, 7
    %p144 = por %p142, %p143
    %p145 = scmp.ne.s32.totalorder %s136, %s137
    %p146 = scmp.eq.s32.totalorder %s21, 0
    %p147 = por %p145, %p146
    %p148 = scmp.ne.s32.totalorder %s136, %s137
    %p149 = scmp.eq.s32.totalorder %s22, 7
    %p150 = por %p148, %p149
    %p152 = scmp.ne.s32.totalorder %s137, %s151
    %p153 = scmp.eq.s32.totalorder %s22, 0
    %p154 = por %p152, %p153
    %s156 = sadd.s32 %s155, 1
    %p159 = scmp.eq.s32.totalorder %s16, 7
    %p160 = scmp.ne.s32.totalorder %s155, %s157
    %p161 = scmp.eq.s32.totalorder %s16, 0
    %p162 = por %p160, %p161
    %p163 = scmp.ne.s32.totalorder %s155, %s157
    %p164 = scmp.eq.s32.totalorder %s21, 7
    %p165 = por %p163, %p164
    %p166 = scmp.ne.s32.totalorder %s157, %s158
    %p167 = scmp.eq.s32.totalorder %s21, 0
    %p168 = por %p166, %p167
    %p169 = scmp.ne.s32.totalorder %s157, %s158
    %p170 = scmp.eq.s32.totalorder %s22, 7
    %p171 = por %p169, %p170
    %p173 = scmp.ne.s32.totalorder %s158, %s172
    %p174 = scmp.eq.s32.totalorder %s22, 0
    %p175 = por %p173, %p174
    %s177 = sadd.s32 %s176, 1
    %p180 = scmp.eq.s32.totalorder %s16, 7
    %p181 = scmp.ne.s32.totalorder %s176, %s178
    %p182 = scmp.eq.s32.totalorder %s16, 0
    %p183 = por %p181, %p182
    %p184 = scmp.ne.s32.totalorder %s176, %s178
    %p185 = scmp.eq.s32.totalorder %s21, 7
    %p186 = por %p184, %p185
    %p187 = scmp.ne.s32.totalorder %s178, %s179
    %p188 = scmp.eq.s32.totalorder %s21, 0
    %p189 = por %p187, %p188
    %p190 = scmp.ne.s32.totalorder %s178, %s179
    %p191 = scmp.eq.s32.totalorder %s22, 7
    %p192 = por %p190, %p191
    %p194 = scmp.ne.s32.totalorder %s179, %s193
    %p195 = scmp.eq.s32.totalorder %s22, 0
    %p196 = por %p194, %p195
    %s198 = sadd.s32 %s197, 1
    %p201 = scmp.eq.s32.totalorder %s16, 7
    %p202 = scmp.ne.s32.totalorder %s197, %s199
    %p203 = scmp.eq.s32.totalorder %s16, 0
    %p204 = por %p202, %p203
    %p205 = scmp.ne.s32.totalorder %s197, %s199
    %p206 = scmp.eq.s32.totalorder %s21, 7
    %p207 = por %p205, %p206
    %p208 = scmp.ne.s32.totalorder %s199, %s200
    %p209 = scmp.eq.s32.totalorder %s21, 0
    %p210 = por %p208, %p209
    %p211 = scmp.ne.s32.totalorder %s199, %s200
    %p212 = scmp.eq.s32.totalorder %s22, 7
    %p213 = por %p211, %p212
    %p215 = scmp.ne.s32.totalorder %s200, %s214
    %p216 = scmp.eq.s32.totalorder %s22, 0
    %p217 = por %p215, %p216
    %s219 = sadd.s32 %s218, 1
    %p222 = scmp.eq.s32.totalorder %s16, 7
    %p223 = scmp.ne.s32.totalorder %s218, %s220
    %p224 = scmp.eq.s32.totalorder %s16, 0
    %p225 = por %p223, %p224
    %p226 = scmp.ne.s32.totalorder %s218, %s220
    %p227 = scmp.eq.s32.totalorder %s21, 7
    %p228 = por %p226, %p227
    %p229 = scmp.ne.s32.totalorder %s220, %s221
    %p230 = scmp.eq.s32.totalorder %s21, 0
    %p231 = por %p229, %p230
    %p232 = scmp.ne.s32.totalorder %s220, %s221
    %p233 = scmp.eq.s32.totalorder %s22, 7
    %p234 = por %p232, %p233
    %p236 = scmp.ne.s32.totalorder %s221, %s235
    %p237 = scmp.eq.s32.totalorder %s22, 0
    %p238 = por %p236, %p237
    %s240 = sadd.s32 %s239, 1
    %p243 = scmp.eq.s32.totalorder %s16, 7
    %p244 = scmp.ne.s32.totalorder %s239, %s241
    %p245 = scmp.eq.s32.totalorder %s16, 0
    %p246 = por %p244, %p245
    %p247 = scmp.ne.s32.totalorder %s239, %s241
    %p248 = scmp.eq.s32.totalorder %s21, 7
    %p249 = por %p247, %p248
    %p250 = scmp.ne.s32.totalorder %s241, %s242
    %p251 = scmp.eq.s32.totalorder %s21, 0
    %p252 = por %p250, %p251
    %p253 = scmp.ne.s32.totalorder %s241, %s242
    %p254 = scmp.eq.s32.totalorder %s22, 7
    %p255 = por %p253, %p254
    %p257 = scmp.ne.s32.totalorder %s242, %s256
    %p258 = scmp.eq.s32.totalorder %s22, 0
    %p259 = por %p257, %p258
    %p260 = scmp.le.s32.totalorder 1, %s16
    %p261 = scmp.lt.s32.totalorder %s16, 9
    %p262 = pnand %p260, %p261
    %p263 = pneg %p262
    // Predicated region
    $region9: #{lstm_model_forward.1} parent=5 // pred_check
      _
    $region10: #{lstm_model_forward.1} parent=5 // pred_check_branch
      %265 = sbr.rel (%p262) target = $region12
    $region11: #{lstm_model_forward.1} parent=5 // pred_region
      %s266 = ssub.s32 %s16, 1
      // Predicated region
      $region13: #{lstm_model_forward.1} parent=11 // pred_check
        %p267 = pneg %p63
      $region14: #{lstm_model_forward.1} parent=11 // pred_check_branch
        %269 = sbr.rel (%p267) target = $region16
      $region15: #{lstm_model_forward.1} parent=11 // pred_region
        _
      $region16: #{lstm_model_forward.1} parent=11 // pred_fallthru
        _
      // Predicated region
      $region17: #{lstm_model_forward.1} parent=11 // pred_check
        %p270 = pneg %p84
      $region18: #{lstm_model_forward.1} parent=11 // pred_check_branch
        %272 = sbr.rel (%p270) target = $region20
      $region19: #{lstm_model_forward.1} parent=11 // pred_region
        _
      $region20: #{lstm_model_forward.1} parent=11 // pred_fallthru
        _
      // Predicated region
      $region21: #{lstm_model_forward.1} parent=11 // pred_check
        %p273 = pneg %p105
      $region22: #{lstm_model_forward.1} parent=11 // pred_check_branch
        %275 = sbr.rel (%p273) target = $region24
      $region23: #{lstm_model_forward.1} parent=11 // pred_region
        _
      $region24: #{lstm_model_forward.1} parent=11 // pred_fallthru
        _
      // Predicated region
      $region25: #{lstm_model_forward.1} parent=11 // pred_check
        %p276 = pneg %p126
      $region26: #{lstm_model_forward.1} parent=11 // pred_check_branch
        %278 = sbr.rel (%p276) target = $region28
      $region27: #{lstm_model_forward.1} parent=11 // pred_region
        _
      $region28: #{lstm_model_forward.1} parent=11 // pred_fallthru
        _
      // Predicated region
      $region29: #{lstm_model_forward.1} parent=11 // pred_check
        %p279 = pneg %p147
      $region30: #{lstm_model_forward.1} parent=11 // pred_check_branch
        %281 = sbr.rel (%p279) target = $region32
      $region31: #{lstm_model_forward.1} parent=11 // pred_region
        _
      $region32: #{lstm_model_forward.1} parent=11 // pred_fallthru
        _
      // Predicated region
      $region33: #{lstm_model_forward.1} parent=11 // pred_check
        %p282 = pneg %p168
      $region34: #{lstm_model_forward.1} parent=11 // pred_check_branch
        %284 = sbr.rel (%p282) target = $region36
      $region35: #{lstm_model_forward.1} parent=11 // pred_region
        _
      $region36: #{lstm_model_forward.1} parent=11 // pred_fallthru
        _
      // Predicated region
      $region37: #{lstm_model_forward.1} parent=11 // pred_check
        %p285 = pneg %p189
      $region38: #{lstm_model_forward.1} parent=11 // pred_check_branch
        %287 = sbr.rel (%p285) target = $region40
      $region39: #{lstm_model_forward.1} parent=11 // pred_region
        _
      $region40: #{lstm_model_forward.1} parent=11 // pred_fallthru
        _
      // Predicated region
      $region41: #{lstm_model_forward.1} parent=11 // pred_check
        %p288 = pneg %p210
      $region42: #{lstm_model_forward.1} parent=11 // pred_check_branch
        %290 = sbr.rel (%p288) target = $region44
      $region43: #{lstm_model_forward.1} parent=11 // pred_region
        _
      $region44: #{lstm_model_forward.1} parent=11 // pred_fallthru
        _
      // Predicated region
      $region45: #{lstm_model_forward.1} parent=11 // pred_check
        %p291 = pneg %p231
      $region46: #{lstm_model_forward.1} parent=11 // pred_check_branch
        %293 = sbr.rel (%p291) target = $region48
      $region47: #{lstm_model_forward.1} parent=11 // pred_region
        _
      $region48: #{lstm_model_forward.1} parent=11 // pred_fallthru
        _
    $region12: #{lstm_model_forward.1} parent=5 // pred_fallthru
      _
    %p294 = scmp.lt.s32.totalorder %s16, 8
    // Predicated region
    $region49: #{lstm_model_forward.1} parent=5 // pred_check
      %p295 = pneg %p294
    $region50: #{lstm_model_forward.1} parent=5 // pred_check_branch
      %297 = sbr.rel (%p295) target = $region52
    $region51: #{lstm_model_forward.1} parent=5 // pred_region
      // Predicated region
      $region53: #{lstm_model_forward.1} parent=51 // pred_check
        %p298 = pneg %p36
      $region54: #{lstm_model_forward.1} parent=51 // pred_check_branch
        %300 = sbr.rel (%p298) target = $region56
      $region55: #{lstm_model_forward.1} parent=51 // pred_region
        %p301 = scmp.lt.s32.totalorder %s16, 7
        %s302 = scalar_select %p301, %s16, 7
        %s303 = smul.addr %s302, 8
        %s304 = scalar_lea.vmem %s0, %s303
      $region56: #{lstm_model_forward.1} parent=51 // pred_fallthru
        _
    $region52: #{lstm_model_forward.1} parent=5 // pred_fallthru
      _
    %p305 = scmp.le.s32.totalorder 1, %s16
    %p306 = scmp.lt.s32.totalorder %s16, 9
    %p307 = pnand %p305, %p306
    %p308 = pneg %p307
    // Predicated region
    $region57: #{lstm_model_forward.1} parent=5 // pred_check
      _
    $region58: #{lstm_model_forward.1} parent=5 // pred_check_branch
      %310 = sbr.rel (%p307) target = $region60
    $region59: #{lstm_model_forward.1} parent=5 // pred_region
      %s311 = ssub.s32 %s16, 1
      %p312 = scmp.lt.s32.totalorder %s21, 7
      %s313 = scalar_select %p312, %s21, 7
      %s314 = smul.addr %s313, 8
      %s315 = scalar_lea.vmem %s0, %s314
      %p316 = pneg %p42
      %p317 = pneg %p39
      %p318 = pneg %p63
      %p319 = pneg %p60
      %p320 = pneg %p84
      %p321 = pneg %p81
      %p322 = pneg %p105
      %p323 = pneg %p102
      %p324 = pneg %p126
      %p325 = pneg %p123
      %p326 = pneg %p147
      %p327 = pneg %p144
      %p328 = pneg %p168
      %p329 = pneg %p165
      %p330 = pneg %p189
      %p331 = pneg %p186
      %p332 = pneg %p210
      %p333 = pneg %p207
      %p334 = pneg %p231
      %p335 = pneg %p228
      %p336 = pneg %p252
      %p337 = pneg %p249
      %p338 = scmp.lt.s32.totalorder %s21, 7
      %s339 = scalar_select %p338, %s21, 7
      %s340 = smul.addr %s339, 8
      %s341 = scalar_lea.vmem %s0, %s340
      %p342 = scmp.eq.s32.totalorder %s21, 0
      // Predicated region
      $region61: #{lstm_model_forward.1} parent=59 // pred_check
        %p343 = pneg %p342
      $region62: #{lstm_model_forward.1} parent=59 // pred_check_branch
        %345 = sbr.rel (%p343) target = $region64
      $region63: #{lstm_model_forward.1} parent=59 // pred_region
        %v346 = vld [vmem:[%s1] sm:$0xff]
        %347 = vst [vmem:[#allocation2] sm:$0xff] %v346
        %348 = vst [vmem:[#allocation3] sm:$0xff] 0.0
        %349 = vst [vmem:[#allocation4] sm:$0xff] 0.0
        %350 = vst [vmem:[#allocation5] sm:$0xff] 0.0
        %351 = vst [vmem:[#allocation5 + $0x8] sm:$0xff] 0.0
        %352 = vst [vmem:[#allocation6] sm:$0xff] 0.0
        %353 = vst [vmem:[#allocation6 + $0x8] sm:$0xff] 0.0
        %354 = vst [vmem:[#allocation7] sm:$0xff] 0.0
        %355 = vst [vmem:[#allocation8] sm:$0xff] 0.0
      $region64: #{lstm_model_forward.1} parent=59 // pred_fallthru
        _
      %v356 = vld [vmem:[%s341] sm:$0xff]
      %v357 = vld [vmem:[#allocation2] sm:$0xff]
      %v358 = vmul.f32 %v356, %v357
      %v359 = vld [vmem:[#allocation3] sm:$0xff]
      %v360 = vld [vmem:[#allocation4] sm:$0xff]
      %v361 = vld [vmem:[%s2] sm:$0xff]
      %v362 = vld [vmem:[%s2 + $0x8] sm:$0xff]
      %v363 = vld [vmem:[%s2 + $0x10] sm:$0xff]
      %v364 = vld [vmem:[%s2 + $0x18] sm:$0xff]
      %v365 = vld [vmem:[%s2 + $0x20] sm:$0xff]
      %v366 = vld [vmem:[%s2 + $0x28] sm:$0xff]
      %v367 = vld [vmem:[%s2 + $0x30] sm:$0xff]
      %v368 = vld [vmem:[%s2 + $0x38] sm:$0xff]
      %v369 = vld [vmem:[%s2 + $0x40] sm:$0xff]
      %v370 = vld [vmem:[%s2 + $0x48] sm:$0xff]
      %v371 = vld [vmem:[%s2 + $0x50] sm:$0xff]
      %v372 = vld [vmem:[%s2 + $0x58] sm:$0xff]
      %v373 = vld [vmem:[%s2 + $0x60] sm:$0xff]
      %v374 = vld [vmem:[%s2 + $0x68] sm:$0xff]
      %v375 = vld [vmem:[%s2 + $0x70] sm:$0xff]
      %v376 = vld [vmem:[%s2 + $0x78] sm:$0xff]
      %v377 = vld [vmem:[%s2 + $0x80] sm:$0xff]
      %v378 = vld [vmem:[%s2 + $0x88] sm:$0xff]
      %v379 = vld [vmem:[%s2 + $0x90] sm:$0xff]
      %v380 = vld [vmem:[%s2 + $0x98] sm:$0xff]
      %v381 = vld [vmem:[%s2 + $0xa0] sm:$0xff]
      %v382 = vld [vmem:[%s2 + $0xa8] sm:$0xff]
      %v383 = vld [vmem:[%s2 + $0xb0] sm:$0xff]
      %v384 = vld [vmem:[%s2 + $0xb8] sm:$0xff]
      %v385 = vld [vmem:[%s2 + $0xc0] sm:$0xff]
      %v386 = vld [vmem:[%s2 + $0xc8] sm:$0xff]
      %v387 = vld [vmem:[%s2 + $0xd0] sm:$0xff]
      %v388 = vld [vmem:[%s2 + $0xd8] sm:$0xff]
      %v389 = vld [vmem:[%s2 + $0xe0] sm:$0xff]
      %v390 = vld [vmem:[%s2 + $0xe8] sm:$0xff]
      %v391 = vld [vmem:[%s2 + $0xf0] sm:$0xff]
      %v392 = vld [vmem:[%s2 + $0xf8] sm:$0xff]
      %v393 = vld [vmem:[%s2 + $0x100] sm:$0xff]
      %v394 = vld [vmem:[%s2 + $0x108] sm:$0xff]
      %v395 = vld [vmem:[%s2 + $0x110] sm:$0xff]
      %v396 = vld [vmem:[%s2 + $0x118] sm:$0xff]
      %v397 = vld [vmem:[%s2 + $0x120] sm:$0xff]
      %v398 = vld [vmem:[%s2 + $0x128] sm:$0xff]
      %v399 = vld [vmem:[%s2 + $0x130] sm:$0xff]
      %v400 = vld [vmem:[%s2 + $0x138] sm:$0xff]
      %v401 = vld [vmem:[%s2 + $0x140] sm:$0xff]
      %v402 = vld [vmem:[%s2 + $0x148] sm:$0xff]
      %v403 = vld [vmem:[%s2 + $0x150] sm:$0xff]
      %v404 = vld [vmem:[%s2 + $0x158] sm:$0xff]
      %v405 = vld [vmem:[%s2 + $0x160] sm:$0xff]
      %v406 = vld [vmem:[%s2 + $0x168] sm:$0xff]
      %v407 = vld [vmem:[%s2 + $0x170] sm:$0xff]
      %v408 = vld [vmem:[%s2 + $0x178] sm:$0xff]
      %v409 = vld [vmem:[%s2 + $0x180] sm:$0xff]
      %v410 = vld [vmem:[%s2 + $0x188] sm:$0xff]
      %v411 = vld [vmem:[%s2 + $0x190] sm:$0xff]
      %v412 = vld [vmem:[%s2 + $0x198] sm:$0xff]
      %v413 = vld [vmem:[%s2 + $0x1a0] sm:$0xff]
      %v414 = vld [vmem:[%s2 + $0x1a8] sm:$0xff]
      %v415 = vld [vmem:[%s2 + $0x1b0] sm:$0xff]
      %v416 = vld [vmem:[%s2 + $0x1b8] sm:$0xff]
      %v417 = vld [vmem:[%s2 + $0x1c0] sm:$0xff]
      %v418 = vld [vmem:[%s2 + $0x1c8] sm:$0xff]
      %v419 = vld [vmem:[%s2 + $0x1d0] sm:$0xff]
      %v420 = vld [vmem:[%s2 + $0x1d8] sm:$0xff]
      %v421 = vld [vmem:[%s2 + $0x1e0] sm:$0xff]
      %v422 = vld [vmem:[%s2 + $0x1e8] sm:$0xff]
      %v423 = vld [vmem:[%s2 + $0x1f0] sm:$0xff]
      %v424 = vld [vmem:[%s2 + $0x1f8] sm:$0xff]
      %v425 = vld [vmem:[%s2 + $0x200] sm:$0xff]
      %v426 = vld [vmem:[%s2 + $0x208] sm:$0xff]
      %v427 = vld [vmem:[%s2 + $0x210] sm:$0xff]
      %v428 = vld [vmem:[%s2 + $0x218] sm:$0xff]
      %v429 = vld [vmem:[%s2 + $0x220] sm:$0xff]
      %v430 = vld [vmem:[%s2 + $0x228] sm:$0xff]
      %v431 = vld [vmem:[%s2 + $0x230] sm:$0xff]
      %v432 = vld [vmem:[%s2 + $0x238] sm:$0xff]
      %v433 = vld [vmem:[%s2 + $0x240] sm:$0xff]
      %v434 = vld [vmem:[%s2 + $0x248] sm:$0xff]
      %v435 = vld [vmem:[%s2 + $0x250] sm:$0xff]
      %v436 = vld [vmem:[%s2 + $0x258] sm:$0xff]
      %v437 = vld [vmem:[%s2 + $0x260] sm:$0xff]
      %v438 = vld [vmem:[%s2 + $0x268] sm:$0xff]
      %v439 = vld [vmem:[%s2 + $0x270] sm:$0xff]
      %v440 = vld [vmem:[%s2 + $0x278] sm:$0xff]
      %v441 = vld [vmem:[%s2 + $0x280] sm:$0xff]
      %v442 = vld [vmem:[%s2 + $0x288] sm:$0xff]
      %v443 = vld [vmem:[%s2 + $0x290] sm:$0xff]
      %v444 = vld [vmem:[%s2 + $0x298] sm:$0xff]
      %v445 = vld [vmem:[%s2 + $0x2a0] sm:$0xff]
      %v446 = vld [vmem:[%s2 + $0x2a8] sm:$0xff]
      %v447 = vld [vmem:[%s2 + $0x2b0] sm:$0xff]
      %v448 = vld [vmem:[%s2 + $0x2b8] sm:$0xff]
      %v449 = vld [vmem:[%s2 + $0x2c0] sm:$0xff]
      %v450 = vld [vmem:[%s2 + $0x2c8] sm:$0xff]
      %v451 = vld [vmem:[%s2 + $0x2d0] sm:$0xff]
      %v452 = vld [vmem:[%s2 + $0x2d8] sm:$0xff]
      %v453 = vld [vmem:[%s2 + $0x2e0] sm:$0xff]
      %v454 = vld [vmem:[%s2 + $0x2e8] sm:$0xff]
      %v455 = vld [vmem:[%s2 + $0x2f0] sm:$0xff]
      %v456 = vld [vmem:[%s2 + $0x2f8] sm:$0xff]
      %v457 = vld [vmem:[%s2 + $0x300] sm:$0xff]
      %v458 = vld [vmem:[%s2 + $0x308] sm:$0xff]
      %v459 = vld [vmem:[%s2 + $0x310] sm:$0xff]
      %v460 = vld [vmem:[%s2 + $0x318] sm:$0xff]
      %v461 = vld [vmem:[%s2 + $0x320] sm:$0xff]
      %v462 = vld [vmem:[%s2 + $0x328] sm:$0xff]
      %v463 = vld [vmem:[%s2 + $0x330] sm:$0xff]
      %v464 = vld [vmem:[%s2 + $0x338] sm:$0xff]
      %v465 = vld [vmem:[%s2 + $0x340] sm:$0xff]
      %v466 = vld [vmem:[%s2 + $0x348] sm:$0xff]
      %v467 = vld [vmem:[%s2 + $0x350] sm:$0xff]
      %v468 = vld [vmem:[%s2 + $0x358] sm:$0xff]
      %v469 = vld [vmem:[%s2 + $0x360] sm:$0xff]
      %v470 = vld [vmem:[%s2 + $0x368] sm:$0xff]
      %v471 = vld [vmem:[%s2 + $0x370] sm:$0xff]
      %v472 = vld [vmem:[%s2 + $0x378] sm:$0xff]
      %v473 = vld [vmem:[%s2 + $0x380] sm:$0xff]
      %v474 = vld [vmem:[%s2 + $0x388] sm:$0xff]
      %v475 = vld [vmem:[%s2 + $0x390] sm:$0xff]
      %v476 = vld [vmem:[%s2 + $0x398] sm:$0xff]
      %v477 = vld [vmem:[%s2 + $0x3a0] sm:$0xff]
      %v478 = vld [vmem:[%s2 + $0x3a8] sm:$0xff]
      %v479 = vld [vmem:[%s2 + $0x3b0] sm:$0xff]
      %v480 = vld [vmem:[%s2 + $0x3b8] sm:$0xff]
      %v481 = vld [vmem:[%s2 + $0x3c0] sm:$0xff]
      %v482 = vld [vmem:[%s2 + $0x3c8] sm:$0xff]
      %v483 = vld [vmem:[%s2 + $0x3d0] sm:$0xff]
      %v484 = vld [vmem:[%s2 + $0x3d8] sm:$0xff]
      %v485 = vld [vmem:[%s2 + $0x3e0] sm:$0xff]
      %v486 = vld [vmem:[%s2 + $0x3e8] sm:$0xff]
      %v487 = vld [vmem:[%s2 + $0x3f0] sm:$0xff]
      %v488 = vld [vmem:[%s2 + $0x3f8] sm:$0xff]
      %v489 = vld [vmem:[%s3] sm:$0xf]
      %v491 = vperm.slane %v489, 0
      %v492 = vperm.slane %v489, 1
      %v493 = vperm.slane %v489, 2
      %v494 = vperm.slane %v489, 3
      %499 = vmatpush.msra.mxu0 %v421
      %500 = vmatpush.msra.mxu0 %v417
      %501 = vmatpush.msra.mxu0 %v413
      %502 = vmatpush.msra.mxu0 %v409
      %503 = vmatpush.msra.mxu0 %v405
      %504 = vmatpush.msra.mxu0 %v401
      %505 = vmatpush.msra.mxu0 %v397
      %506 = vmatpush.msra.mxu0 %v393
      %507 = vmatpush.msra.mxu0 %v389
      %508 = vmatpush.msra.mxu0 %v385
      %509 = vmatpush.msra.mxu0 %v381
      %510 = vmatpush.msra.mxu0 %v377
      %511 = vmatpush.msra.mxu0 %v373
      %512 = vmatpush.msra.mxu0 %v369
      %513 = vmatpush.msra.mxu0 %v365
      %514 = vmatpush.msra.mxu0 %v361
      %515 = vmatmul.f32.gmra.mxu0 %v358
      %v516 = vpop.f32.mrf.mxu0
      %v517 = vadd.f32 %v491, %v516
      %518 = vdwg.mxu0
      %519 = vmatpush.msra.mxu0 %v485
      %520 = vmatpush.msra.mxu0 %v481
      %521 = vmatpush.msra.mxu0 %v477
      %522 = vmatpush.msra.mxu0 %v473
      %523 = vmatpush.msra.mxu0 %v469
      %524 = vmatpush.msra.mxu0 %v465
      %525 = vmatpush.msra.mxu0 %v461
      %526 = vmatpush.msra.mxu0 %v457
      %527 = vmatpush.msra.mxu0 %v453
      %528 = vmatpush.msra.mxu0 %v449
      %529 = vmatpush.msra.mxu0 %v445
      %530 = vmatpush.msra.mxu0 %v441
      %531 = vmatpush.msra.mxu0 %v437
      %532 = vmatpush.msra.mxu0 %v433
      %533 = vmatpush.msra.mxu0 %v429
      %534 = vmatpush.msra.mxu0 %v425
      %535 = vmatmul.f32.gmra.mxu0 %v359
      %v536 = vpop.f32.mrf.mxu0
      %v537 = vadd.f32 %v517, %v536
      %538 = vdwg.mxu0
      %539 = vmatpush.msra.mxu0 %v422
      %540 = vmatpush.msra.mxu0 %v418
      %541 = vmatpush.msra.mxu0 %v414
      %542 = vmatpush.msra.mxu0 %v410
      %543 = vmatpush.msra.mxu0 %v406
      %544 = vmatpush.msra.mxu0 %v402
      %545 = vmatpush.msra.mxu0 %v398
      %546 = vmatpush.msra.mxu0 %v394
      %547 = vmatpush.msra.mxu0 %v390
      %548 = vmatpush.msra.mxu0 %v386
      %549 = vmatpush.msra.mxu0 %v382
      %550 = vmatpush.msra.mxu0 %v378
      %551 = vmatpush.msra.mxu0 %v374
      %552 = vmatpush.msra.mxu0 %v370
      %553 = vmatpush.msra.mxu0 %v366
      %554 = vmatpush.msra.mxu0 %v362
      %555 = vmatmul.f32.gmra.mxu0 %v358
      %v556 = vpop.f32.mrf.mxu0
      %v557 = vadd.f32 %v492, %v556
      %558 = vdwg.mxu0
      %559 = vmatpush.msra.mxu0 %v486
      %560 = vmatpush.msra.mxu0 %v482
      %561 = vmatpush.msra.mxu0 %v478
      %562 = vmatpush.msra.mxu0 %v474
      %563 = vmatpush.msra.mxu0 %v470
      %564 = vmatpush.msra.mxu0 %v466
      %565 = vmatpush.msra.mxu0 %v462
      %566 = vmatpush.msra.mxu0 %v458
      %567 = vmatpush.msra.mxu0 %v454
      %568 = vmatpush.msra.mxu0 %v450
      %569 = vmatpush.msra.mxu0 %v446
      %570 = vmatpush.msra.mxu0 %v442
      %571 = vmatpush.msra.mxu0 %v438
      %572 = vmatpush.msra.mxu0 %v434
      %573 = vmatpush.msra.mxu0 %v430
      %574 = vmatpush.msra.mxu0 %v426
      %575 = vmatmul.f32.gmra.mxu0 %v359
      %v576 = vpop.f32.mrf.mxu0
      %v577 = vadd.f32 %v557, %v576
      %578 = vdwg.mxu0
      %579 = vmatpush.msra.mxu0 %v423
      %580 = vmatpush.msra.mxu0 %v419
      %581 = vmatpush.msra.mxu0 %v415
      %582 = vmatpush.msra.mxu0 %v411
      %583 = vmatpush.msra.mxu0 %v407
      %584 = vmatpush.msra.mxu0 %v403
      %585 = vmatpush.msra.mxu0 %v399
      %586 = vmatpush.msra.mxu0 %v395
      %587 = vmatpush.msra.mxu0 %v391
      %588 = vmatpush.msra.mxu0 %v387
      %589 = vmatpush.msra.mxu0 %v383
      %590 = vmatpush.msra.mxu0 %v379
      %591 = vmatpush.msra.mxu0 %v375
      %592 = vmatpush.msra.mxu0 %v371
      %593 = vmatpush.msra.mxu0 %v367
      %594 = vmatpush.msra.mxu0 %v363
      %595 = vmatmul.f32.gmra.mxu0 %v358
      %v596 = vpop.f32.mrf.mxu0
      %v597 = vadd.f32 %v493, %v596
      %598 = vdwg.mxu0
      %599 = vmatpush.msra.mxu0 %v487
      %600 = vmatpush.msra.mxu0 %v483
      %601 = vmatpush.msra.mxu0 %v479
      %602 = vmatpush.msra.mxu0 %v475
      %603 = vmatpush.msra.mxu0 %v471
      %604 = vmatpush.msra.mxu0 %v467
      %605 = vmatpush.msra.mxu0 %v463
      %606 = vmatpush.msra.mxu0 %v459
      %607 = vmatpush.msra.mxu0 %v455
      %608 = vmatpush.msra.mxu0 %v451
      %609 = vmatpush.msra.mxu0 %v447
      %610 = vmatpush.msra.mxu0 %v443
      %611 = vmatpush.msra.mxu0 %v439
      %612 = vmatpush.msra.mxu0 %v435
      %613 = vmatpush.msra.mxu0 %v431
      %614 = vmatpush.msra.mxu0 %v427
      %615 = vmatmul.f32.gmra.mxu0 %v359
      %v616 = vpop.f32.mrf.mxu0
      %v617 = vadd.f32 %v597, %v616
      %618 = vdwg.mxu0
      %619 = vmatpush.msra.mxu0 %v424
      %620 = vmatpush.msra.mxu0 %v420
      %621 = vmatpush.msra.mxu0 %v416
      %622 = vmatpush.msra.mxu0 %v412
      %623 = vmatpush.msra.mxu0 %v408
      %624 = vmatpush.msra.mxu0 %v404
      %625 = vmatpush.msra.mxu0 %v400
      %626 = vmatpush.msra.mxu0 %v396
      %627 = vmatpush.msra.mxu0 %v392
      %628 = vmatpush.msra.mxu0 %v388
      %629 = vmatpush.msra.mxu0 %v384
      %630 = vmatpush.msra.mxu0 %v380
      %631 = vmatpush.msra.mxu0 %v376
      %632 = vmatpush.msra.mxu0 %v372
      %633 = vmatpush.msra.mxu0 %v368
      %634 = vmatpush.msra.mxu0 %v364
      %635 = vmatmul.f32.gmra.mxu0 %v358
      %v636 = vpop.f32.mrf.mxu0
      %v637 = vadd.f32 %v494, %v636
      %638 = vdwg.mxu0
      %639 = vmatpush.msra.mxu0 %v488
      %640 = vmatpush.msra.mxu0 %v484
      %641 = vmatpush.msra.mxu0 %v480
      %642 = vmatpush.msra.mxu0 %v476
      %643 = vmatpush.msra.mxu0 %v472
      %644 = vmatpush.msra.mxu0 %v468
      %645 = vmatpush.msra.mxu0 %v464
      %646 = vmatpush.msra.mxu0 %v460
      %647 = vmatpush.msra.mxu0 %v456
      %648 = vmatpush.msra.mxu0 %v452
      %649 = vmatpush.msra.mxu0 %v448
      %650 = vmatpush.msra.mxu0 %v444
      %651 = vmatpush.msra.mxu0 %v440
      %652 = vmatpush.msra.mxu0 %v436
      %653 = vmatpush.msra.mxu0 %v432
      %654 = vmatpush.msra.mxu0 %v428
      %655 = vmatmul.f32.gmra.mxu0 %v359
      %v656 = vpop.f32.mrf.mxu0
      %v657 = vadd.f32 %v637, %v656
      %658 = vdwg.mxu0
      %v659 = vsub.f32 0.0, %v537
      %v660 = vmul.f32 %v659, 1.442695
      %v661 = vpow.pop %v660
      %v662 = vadd.f32 %v661, 1.0
      %v663 = vrcp.pop %v662
      %v664 = vsub.f32 0.0, %v577
      %v665 = vmul.f32 %v664, 1.442695
      %v666 = vpow.pop %v665
      %v667 = vadd.f32 %v666, 1.0
      %v668 = vrcp.pop %v667
      %v669 = vtanh.pop %v617
      %v670 = vsub.f32 0.0, %v657
      %v671 = vmul.f32 %v670, 1.442695
      %v672 = vpow.pop %v671
      %v673 = vadd.f32 %v672, 1.0
      %v674 = vrcp.pop %v673
      %v675 = vmul.f32 %v668, %v360
      %v676 = vmul.f32 %v663, %v669
      %v677 = vadd.f32 %v675, %v676
      %v678 = vtanh.pop %v677
      %v679 = vmul.f32 %v674, %v678
      %v680 = vld [vmem:[#allocation5] sm:$0xff]
      %v681 = vld [vmem:[#allocation5 + $0x8] sm:$0xff]
      %v682 = vld [vmem:[#allocation6] sm:$0xff]
      %v683 = vld [vmem:[#allocation6 + $0x8] sm:$0xff]
      %v684 = vld [vmem:[%s4] sm:$0xff]
      %v685 = vld [vmem:[%s4 + $0x8] sm:$0xff]
      %v686 = vld [vmem:[%s4 + $0x10] sm:$0xff]
      %v687 = vld [vmem:[%s4 + $0x18] sm:$0xff]
      %v688 = vld [vmem:[%s4 + $0x20] sm:$0xff]
      %v689 = vld [vmem:[%s4 + $0x28] sm:$0xff]
      %v690 = vld [vmem:[%s4 + $0x30] sm:$0xff]
      %v691 = vld [vmem:[%s4 + $0x38] sm:$0xff]
      %v692 = vld [vmem:[%s4 + $0x40] sm:$0xff]
      %v693 = vld [vmem:[%s4 + $0x48] sm:$0xff]
      %v694 = vld [vmem:[%s4 + $0x50] sm:$0xff]
      %v695 = vld [vmem:[%s4 + $0x58] sm:$0xff]
      %v696 = vld [vmem:[%s4 + $0x60] sm:$0xff]
      %v697 = vld [vmem:[%s4 + $0x68] sm:$0xff]
      %v698 = vld [vmem:[%s4 + $0x70] sm:$0xff]
      %v699 = vld [vmem:[%s4 + $0x78] sm:$0xff]
      %v700 = vld [vmem:[%s4 + $0x80] sm:$0xff]
      %v701 = vld [vmem:[%s4 + $0x88] sm:$0xff]
      %v702 = vld [vmem:[%s4 + $0x90] sm:$0xff]
      %v703 = vld [vmem:[%s4 + $0x98] sm:$0xff]
      %v704 = vld [vmem:[%s4 + $0xa0] sm:$0xff]
      %v705 = vld [vmem:[%s4 + $0xa8] sm:$0xff]
      %v706 = vld [vmem:[%s4 + $0xb0] sm:$0xff]
      %v707 = vld [vmem:[%s4 + $0xb8] sm:$0xff]
      %v708 = vld [vmem:[%s4 + $0xc0] sm:$0xff]
      %v709 = vld [vmem:[%s4 + $0xc8] sm:$0xff]
      %v710 = vld [vmem:[%s4 + $0xd0] sm:$0xff]
      %v711 = vld [vmem:[%s4 + $0xd8] sm:$0xff]
      %v712 = vld [vmem:[%s4 + $0xe0] sm:$0xff]
      %v713 = vld [vmem:[%s4 + $0xe8] sm:$0xff]
      %v714 = vld [vmem:[%s4 + $0xf0] sm:$0xff]
      %v715 = vld [vmem:[%s4 + $0xf8] sm:$0xff]
      %v716 = vld [vmem:[%s4 + $0x100] sm:$0xff]
      %v717 = vld [vmem:[%s4 + $0x108] sm:$0xff]
      %v718 = vld [vmem:[%s4 + $0x110] sm:$0xff]
      %v719 = vld [vmem:[%s4 + $0x118] sm:$0xff]
      %v720 = vld [vmem:[%s4 + $0x120] sm:$0xff]
      %v721 = vld [vmem:[%s4 + $0x128] sm:$0xff]
      %v722 = vld [vmem:[%s4 + $0x130] sm:$0xff]
      %v723 = vld [vmem:[%s4 + $0x138] sm:$0xff]
      %v724 = vld [vmem:[%s4 + $0x140] sm:$0xff]
      %v725 = vld [vmem:[%s4 + $0x148] sm:$0xff]
      %v726 = vld [vmem:[%s4 + $0x150] sm:$0xff]
      %v727 = vld [vmem:[%s4 + $0x158] sm:$0xff]
      %v728 = vld [vmem:[%s4 + $0x160] sm:$0xff]
      %v729 = vld [vmem:[%s4 + $0x168] sm:$0xff]
      %v730 = vld [vmem:[%s4 + $0x170] sm:$0xff]
      %v731 = vld [vmem:[%s4 + $0x178] sm:$0xff]
      %v732 = vld [vmem:[%s4 + $0x180] sm:$0xff]
      %v733 = vld [vmem:[%s4 + $0x188] sm:$0xff]
      %v734 = vld [vmem:[%s4 + $0x190] sm:$0xff]
      %v735 = vld [vmem:[%s4 + $0x198] sm:$0xff]
      %v736 = vld [vmem:[%s4 + $0x1a0] sm:$0xff]
      %v737 = vld [vmem:[%s4 + $0x1a8] sm:$0xff]
      %v738 = vld [vmem:[%s4 + $0x1b0] sm:$0xff]
      %v739 = vld [vmem:[%s4 + $0x1b8] sm:$0xff]
      %v740 = vld [vmem:[%s4 + $0x1c0] sm:$0xff]
      %v741 = vld [vmem:[%s4 + $0x1c8] sm:$0xff]
      %v742 = vld [vmem:[%s4 + $0x1d0] sm:$0xff]
      %v743 = vld [vmem:[%s4 + $0x1d8] sm:$0xff]
      %v744 = vld [vmem:[%s4 + $0x1e0] sm:$0xff]
      %v745 = vld [vmem:[%s4 + $0x1e8] sm:$0xff]
      %v746 = vld [vmem:[%s4 + $0x1f0] sm:$0xff]
      %v747 = vld [vmem:[%s4 + $0x1f8] sm:$0xff]
      %v748 = vld [vmem:[%s4 + $0x200] sm:$0xff]
      %v749 = vld [vmem:[%s4 + $0x208] sm:$0xff]
      %v750 = vld [vmem:[%s4 + $0x210] sm:$0xff]
      %v751 = vld [vmem:[%s4 + $0x218] sm:$0xff]
      %v752 = vld [vmem:[%s4 + $0x220] sm:$0xff]
      %v753 = vld [vmem:[%s4 + $0x228] sm:$0xff]
      %v754 = vld [vmem:[%s4 + $0x230] sm:$0xff]
      %v755 = vld [vmem:[%s4 + $0x238] sm:$0xff]
      %v756 = vld [vmem:[%s4 + $0x240] sm:$0xff]
      %v757 = vld [vmem:[%s4 + $0x248] sm:$0xff]
      %v758 = vld [vmem:[%s4 + $0x250] sm:$0xff]
      %v759 = vld [vmem:[%s4 + $0x258] sm:$0xff]
      %v760 = vld [vmem:[%s4 + $0x260] sm:$0xff]
      %v761 = vld [vmem:[%s4 + $0x268] sm:$0xff]
      %v762 = vld [vmem:[%s4 + $0x270] sm:$0xff]
      %v763 = vld [vmem:[%s4 + $0x278] sm:$0xff]
      %v764 = vld [vmem:[%s4 + $0x280] sm:$0xff]
      %v765 = vld [vmem:[%s4 + $0x288] sm:$0xff]
      %v766 = vld [vmem:[%s4 + $0x290] sm:$0xff]
      %v767 = vld [vmem:[%s4 + $0x298] sm:$0xff]
      %v768 = vld [vmem:[%s4 + $0x2a0] sm:$0xff]
      %v769 = vld [vmem:[%s4 + $0x2a8] sm:$0xff]
      %v770 = vld [vmem:[%s4 + $0x2b0] sm:$0xff]
      %v771 = vld [vmem:[%s4 + $0x2b8] sm:$0xff]
      %v772 = vld [vmem:[%s4 + $0x2c0] sm:$0xff]
      %v773 = vld [vmem:[%s4 + $0x2c8] sm:$0xff]
      %v774 = vld [vmem:[%s4 + $0x2d0] sm:$0xff]
      %v775 = vld [vmem:[%s4 + $0x2d8] sm:$0xff]
      %v776 = vld [vmem:[%s4 + $0x2e0] sm:$0xff]
      %v777 = vld [vmem:[%s4 + $0x2e8] sm:$0xff]
      %v778 = vld [vmem:[%s4 + $0x2f0] sm:$0xff]
      %v779 = vld [vmem:[%s4 + $0x2f8] sm:$0xff]
      %v780 = vld [vmem:[%s4 + $0x300] sm:$0xff]
      %v781 = vld [vmem:[%s4 + $0x308] sm:$0xff]
      %v782 = vld [vmem:[%s4 + $0x310] sm:$0xff]
      %v783 = vld [vmem:[%s4 + $0x318] sm:$0xff]
      %v784 = vld [vmem:[%s4 + $0x320] sm:$0xff]
      %v785 = vld [vmem:[%s4 + $0x328] sm:$0xff]
      %v786 = vld [vmem:[%s4 + $0x330] sm:$0xff]
      %v787 = vld [vmem:[%s4 + $0x338] sm:$0xff]
      %v788 = vld [vmem:[%s4 + $0x340] sm:$0xff]
      %v789 = vld [vmem:[%s4 + $0x348] sm:$0xff]
      %v790 = vld [vmem:[%s4 + $0x350] sm:$0xff]
      %v791 = vld [vmem:[%s4 + $0x358] sm:$0xff]
      %v792 = vld [vmem:[%s4 + $0x360] sm:$0xff]
      %v793 = vld [vmem:[%s4 + $0x368] sm:$0xff]
      %v794 = vld [vmem:[%s4 + $0x370] sm:$0xff]
      %v795 = vld [vmem:[%s4 + $0x378] sm:$0xff]
      %v796 = vld [vmem:[%s4 + $0x380] sm:$0xff]
      %v797 = vld [vmem:[%s4 + $0x388] sm:$0xff]
      %v798 = vld [vmem:[%s4 + $0x390] sm:$0xff]
      %v799 = vld [vmem:[%s4 + $0x398] sm:$0xff]
      %v800 = vld [vmem:[%s4 + $0x3a0] sm:$0xff]
      %v801 = vld [vmem:[%s4 + $0x3a8] sm:$0xff]
      %v802 = vld [vmem:[%s4 + $0x3b0] sm:$0xff]
      %v803 = vld [vmem:[%s4 + $0x3b8] sm:$0xff]
      %v804 = vld [vmem:[%s4 + $0x3c0] sm:$0xff]
      %v805 = vld [vmem:[%s4 + $0x3c8] sm:$0xff]
      %v806 = vld [vmem:[%s4 + $0x3d0] sm:$0xff]
      %v807 = vld [vmem:[%s4 + $0x3d8] sm:$0xff]
      %v808 = vld [vmem:[%s4 + $0x3e0] sm:$0xff]
      %v809 = vld [vmem:[%s4 + $0x3e8] sm:$0xff]
      %v810 = vld [vmem:[%s4 + $0x3f0] sm:$0xff]
      %v811 = vld [vmem:[%s4 + $0x3f8] sm:$0xff]
      %v812 = vld [vmem:[%s4 + $0x400] sm:$0xff]
      %v813 = vld [vmem:[%s4 + $0x408] sm:$0xff]
      %v814 = vld [vmem:[%s4 + $0x410] sm:$0xff]
      %v815 = vld [vmem:[%s4 + $0x418] sm:$0xff]
      %v816 = vld [vmem:[%s4 + $0x420] sm:$0xff]
      %v817 = vld [vmem:[%s4 + $0x428] sm:$0xff]
      %v818 = vld [vmem:[%s4 + $0x430] sm:$0xff]
      %v819 = vld [vmem:[%s4 + $0x438] sm:$0xff]
      %v820 = vld [vmem:[%s4 + $0x440] sm:$0xff]
      %v821 = vld [vmem:[%s4 + $0x448] sm:$0xff]
      %v822 = vld [vmem:[%s4 + $0x450] sm:$0xff]
      %v823 = vld [vmem:[%s4 + $0x458] sm:$0xff]
      %v824 = vld [vmem:[%s4 + $0x460] sm:$0xff]
      %v825 = vld [vmem:[%s4 + $0x468] sm:$0xff]
      %v826 = vld [vmem:[%s4 + $0x470] sm:$0xff]
      %v827 = vld [vmem:[%s4 + $0x478] sm:$0xff]
      %v828 = vld [vmem:[%s4 + $0x480] sm:$0xff]
      %v829 = vld [vmem:[%s4 + $0x488] sm:$0xff]
      %v830 = vld [vmem:[%s4 + $0x490] sm:$0xff]
      %v831 = vld [vmem:[%s4 + $0x498] sm:$0xff]
      %v832 = vld [vmem:[%s4 + $0x4a0] sm:$0xff]
      %v833 = vld [vmem:[%s4 + $0x4a8] sm:$0xff]
      %v834 = vld [vmem:[%s4 + $0x4b0] sm:$0xff]
      %v835 = vld [vmem:[%s4 + $0x4b8] sm:$0xff]
      %v836 = vld [vmem:[%s4 + $0x4c0] sm:$0xff]
      %v837 = vld [vmem:[%s4 + $0x4c8] sm:$0xff]
      %v838 = vld [vmem:[%s4 + $0x4d0] sm:$0xff]
      %v839 = vld [vmem:[%s4 + $0x4d8] sm:$0xff]
      %v840 = vld [vmem:[%s4 + $0x4e0] sm:$0xff]
      %v841 = vld [vmem:[%s4 + $0x4e8] sm:$0xff]
      %v842 = vld [vmem:[%s4 + $0x4f0] sm:$0xff]
      %v843 = vld [vmem:[%s4 + $0x4f8] sm:$0xff]
      %v844 = vld [vmem:[%s4 + $0x500] sm:$0xff]
      %v845 = vld [vmem:[%s4 + $0x508] sm:$0xff]
      %v846 = vld [vmem:[%s4 + $0x510] sm:$0xff]
      %v847 = vld [vmem:[%s4 + $0x518] sm:$0xff]
      %v848 = vld [vmem:[%s4 + $0x520] sm:$0xff]
      %v849 = vld [vmem:[%s4 + $0x528] sm:$0xff]
      %v850 = vld [vmem:[%s4 + $0x530] sm:$0xff]
      %v851 = vld [vmem:[%s4 + $0x538] sm:$0xff]
      %v852 = vld [vmem:[%s4 + $0x540] sm:$0xff]
      %v853 = vld [vmem:[%s4 + $0x548] sm:$0xff]
      %v854 = vld [vmem:[%s4 + $0x550] sm:$0xff]
      %v855 = vld [vmem:[%s4 + $0x558] sm:$0xff]
      %v856 = vld [vmem:[%s4 + $0x560] sm:$0xff]
      %v857 = vld [vmem:[%s4 + $0x568] sm:$0xff]
      %v858 = vld [vmem:[%s4 + $0x570] sm:$0xff]
      %v859 = vld [vmem:[%s4 + $0x578] sm:$0xff]
      %v860 = vld [vmem:[%s4 + $0x580] sm:$0xff]
      %v861 = vld [vmem:[%s4 + $0x588] sm:$0xff]
      %v862 = vld [vmem:[%s4 + $0x590] sm:$0xff]
      %v863 = vld [vmem:[%s4 + $0x598] sm:$0xff]
      %v864 = vld [vmem:[%s4 + $0x5a0] sm:$0xff]
      %v865 = vld [vmem:[%s4 + $0x5a8] sm:$0xff]
      %v866 = vld [vmem:[%s4 + $0x5b0] sm:$0xff]
      %v867 = vld [vmem:[%s4 + $0x5b8] sm:$0xff]
      %v868 = vld [vmem:[%s4 + $0x5c0] sm:$0xff]
      %v869 = vld [vmem:[%s4 + $0x5c8] sm:$0xff]
      %v870 = vld [vmem:[%s4 + $0x5d0] sm:$0xff]
      %v871 = vld [vmem:[%s4 + $0x5d8] sm:$0xff]
      %v872 = vld [vmem:[%s4 + $0x5e0] sm:$0xff]
      %v873 = vld [vmem:[%s4 + $0x5e8] sm:$0xff]
      %v874 = vld [vmem:[%s4 + $0x5f0] sm:$0xff]
      %v875 = vld [vmem:[%s4 + $0x5f8] sm:$0xff]
      %v876 = vld [vmem:[%s4 + $0x600] sm:$0xff]
      %v877 = vld [vmem:[%s4 + $0x608] sm:$0xff]
      %v878 = vld [vmem:[%s4 + $0x610] sm:$0xff]
      %v879 = vld [vmem:[%s4 + $0x618] sm:$0xff]
      %v880 = vld [vmem:[%s4 + $0x620] sm:$0xff]
      %v881 = vld [vmem:[%s4 + $0x628] sm:$0xff]
      %v882 = vld [vmem:[%s4 + $0x630] sm:$0xff]
      %v883 = vld [vmem:[%s4 + $0x638] sm:$0xff]
      %v884 = vld [vmem:[%s4 + $0x640] sm:$0xff]
      %v885 = vld [vmem:[%s4 + $0x648] sm:$0xff]
      %v886 = vld [vmem:[%s4 + $0x650] sm:$0xff]
      %v887 = vld [vmem:[%s4 + $0x658] sm:$0xff]
      %v888 = vld [vmem:[%s4 + $0x660] sm:$0xff]
      %v889 = vld [vmem:[%s4 + $0x668] sm:$0xff]
      %v890 = vld [vmem:[%s4 + $0x670] sm:$0xff]
      %v891 = vld [vmem:[%s4 + $0x678] sm:$0xff]
      %v892 = vld [vmem:[%s4 + $0x680] sm:$0xff]
      %v893 = vld [vmem:[%s4 + $0x688] sm:$0xff]
      %v894 = vld [vmem:[%s4 + $0x690] sm:$0xff]
      %v895 = vld [vmem:[%s4 + $0x698] sm:$0xff]
      %v896 = vld [vmem:[%s4 + $0x6a0] sm:$0xff]
      %v897 = vld [vmem:[%s4 + $0x6a8] sm:$0xff]
      %v898 = vld [vmem:[%s4 + $0x6b0] sm:$0xff]
      %v899 = vld [vmem:[%s4 + $0x6b8] sm:$0xff]
      %v900 = vld [vmem:[%s4 + $0x6c0] sm:$0xff]
      %v901 = vld [vmem:[%s4 + $0x6c8] sm:$0xff]
      %v902 = vld [vmem:[%s4 + $0x6d0] sm:$0xff]
      %v903 = vld [vmem:[%s4 + $0x6d8] sm:$0xff]
      %v904 = vld [vmem:[%s4 + $0x6e0] sm:$0xff]
      %v905 = vld [vmem:[%s4 + $0x6e8] sm:$0xff]
      %v906 = vld [vmem:[%s4 + $0x6f0] sm:$0xff]
      %v907 = vld [vmem:[%s4 + $0x6f8] sm:$0xff]
      %v908 = vld [vmem:[%s4 + $0x700] sm:$0xff]
      %v909 = vld [vmem:[%s4 + $0x708] sm:$0xff]
      %v910 = vld [vmem:[%s4 + $0x710] sm:$0xff]
      %v911 = vld [vmem:[%s4 + $0x718] sm:$0xff]
      %v912 = vld [vmem:[%s4 + $0x720] sm:$0xff]
      %v913 = vld [vmem:[%s4 + $0x728] sm:$0xff]
      %v914 = vld [vmem:[%s4 + $0x730] sm:$0xff]
      %v915 = vld [vmem:[%s4 + $0x738] sm:$0xff]
      %v916 = vld [vmem:[%s4 + $0x740] sm:$0xff]
      %v917 = vld [vmem:[%s4 + $0x748] sm:$0xff]
      %v918 = vld [vmem:[%s4 + $0x750] sm:$0xff]
      %v919 = vld [vmem:[%s4 + $0x758] sm:$0xff]
      %v920 = vld [vmem:[%s4 + $0x760] sm:$0xff]
      %v921 = vld [vmem:[%s4 + $0x768] sm:$0xff]
      %v922 = vld [vmem:[%s4 + $0x770] sm:$0xff]
      %v923 = vld [vmem:[%s4 + $0x778] sm:$0xff]
      %v924 = vld [vmem:[%s4 + $0x780] sm:$0xff]
      %v925 = vld [vmem:[%s4 + $0x788] sm:$0xff]
      %v926 = vld [vmem:[%s4 + $0x790] sm:$0xff]
      %v927 = vld [vmem:[%s4 + $0x798] sm:$0xff]
      %v928 = vld [vmem:[%s4 + $0x7a0] sm:$0xff]
      %v929 = vld [vmem:[%s4 + $0x7a8] sm:$0xff]
      %v930 = vld [vmem:[%s4 + $0x7b0] sm:$0xff]
      %v931 = vld [vmem:[%s4 + $0x7b8] sm:$0xff]
      %v932 = vld [vmem:[%s4 + $0x7c0] sm:$0xff]
      %v933 = vld [vmem:[%s4 + $0x7c8] sm:$0xff]
      %v934 = vld [vmem:[%s4 + $0x7d0] sm:$0xff]
      %v935 = vld [vmem:[%s4 + $0x7d8] sm:$0xff]
      %v936 = vld [vmem:[%s4 + $0x7e0] sm:$0xff]
      %v937 = vld [vmem:[%s4 + $0x7e8] sm:$0xff]
      %v938 = vld [vmem:[%s4 + $0x7f0] sm:$0xff]
      %v939 = vld [vmem:[%s4 + $0x7f8] sm:$0xff]
      %v940 = vld [vmem:[%s4 + $0x800] sm:$0xff]
      %v941 = vld [vmem:[%s4 + $0x808] sm:$0xff]
      %v942 = vld [vmem:[%s4 + $0x810] sm:$0xff]
      %v943 = vld [vmem:[%s4 + $0x818] sm:$0xff]
      %v944 = vld [vmem:[%s4 + $0x820] sm:$0xff]
      %v945 = vld [vmem:[%s4 + $0x828] sm:$0xff]
      %v946 = vld [vmem:[%s4 + $0x830] sm:$0xff]
      %v947 = vld [vmem:[%s4 + $0x838] sm:$0xff]
      %v948 = vld [vmem:[%s4 + $0x840] sm:$0xff]
      %v949 = vld [vmem:[%s4 + $0x848] sm:$0xff]
      %v950 = vld [vmem:[%s4 + $0x850] sm:$0xff]
      %v951 = vld [vmem:[%s4 + $0x858] sm:$0xff]
      %v952 = vld [vmem:[%s4 + $0x860] sm:$0xff]
      %v953 = vld [vmem:[%s4 + $0x868] sm:$0xff]
      %v954 = vld [vmem:[%s4 + $0x870] sm:$0xff]
      %v955 = vld [vmem:[%s4 + $0x878] sm:$0xff]
      %v956 = vld [vmem:[%s4 + $0x880] sm:$0xff]
      %v957 = vld [vmem:[%s4 + $0x888] sm:$0xff]
      %v958 = vld [vmem:[%s4 + $0x890] sm:$0xff]
      %v959 = vld [vmem:[%s4 + $0x898] sm:$0xff]
      %v960 = vld [vmem:[%s4 + $0x8a0] sm:$0xff]
      %v961 = vld [vmem:[%s4 + $0x8a8] sm:$0xff]
      %v962 = vld [vmem:[%s4 + $0x8b0] sm:$0xff]
      %v963 = vld [vmem:[%s4 + $0x8b8] sm:$0xff]
      %v964 = vld [vmem:[%s4 + $0x8c0] sm:$0xff]
      %v965 = vld [vmem:[%s4 + $0x8c8] sm:$0xff]
      %v966 = vld [vmem:[%s4 + $0x8d0] sm:$0xff]
      %v967 = vld [vmem:[%s4 + $0x8d8] sm:$0xff]
      %v968 = vld [vmem:[%s4 + $0x8e0] sm:$0xff]
      %v969 = vld [vmem:[%s4 + $0x8e8] sm:$0xff]
      %v970 = vld [vmem:[%s4 + $0x8f0] sm:$0xff]
      %v971 = vld [vmem:[%s4 + $0x8f8] sm:$0xff]
      %v972 = vld [vmem:[%s4 + $0x900] sm:$0xff]
      %v973 = vld [vmem:[%s4 + $0x908] sm:$0xff]
      %v974 = vld [vmem:[%s4 + $0x910] sm:$0xff]
      %v975 = vld [vmem:[%s4 + $0x918] sm:$0xff]
      %v976 = vld [vmem:[%s4 + $0x920] sm:$0xff]
      %v977 = vld [vmem:[%s4 + $0x928] sm:$0xff]
      %v978 = vld [vmem:[%s4 + $0x930] sm:$0xff]
      %v979 = vld [vmem:[%s4 + $0x938] sm:$0xff]
      %v980 = vld [vmem:[%s4 + $0x940] sm:$0xff]
      %v981 = vld [vmem:[%s4 + $0x948] sm:$0xff]
      %v982 = vld [vmem:[%s4 + $0x950] sm:$0xff]
      %v983 = vld [vmem:[%s4 + $0x958] sm:$0xff]
      %v984 = vld [vmem:[%s4 + $0x960] sm:$0xff]
      %v985 = vld [vmem:[%s4 + $0x968] sm:$0xff]
      %v986 = vld [vmem:[%s4 + $0x970] sm:$0xff]
      %v987 = vld [vmem:[%s4 + $0x978] sm:$0xff]
      %v988 = vld [vmem:[%s4 + $0x980] sm:$0xff]
      %v989 = vld [vmem:[%s4 + $0x988] sm:$0xff]
      %v990 = vld [vmem:[%s4 + $0x990] sm:$0xff]
      %v991 = vld [vmem:[%s4 + $0x998] sm:$0xff]
      %v992 = vld [vmem:[%s4 + $0x9a0] sm:$0xff]
      %v993 = vld [vmem:[%s4 + $0x9a8] sm:$0xff]
      %v994 = vld [vmem:[%s4 + $0x9b0] sm:$0xff]
      %v995 = vld [vmem:[%s4 + $0x9b8] sm:$0xff]
      %v996 = vld [vmem:[%s4 + $0x9c0] sm:$0xff]
      %v997 = vld [vmem:[%s4 + $0x9c8] sm:$0xff]
      %v998 = vld [vmem:[%s4 + $0x9d0] sm:$0xff]
      %v999 = vld [vmem:[%s4 + $0x9d8] sm:$0xff]
      %v1000 = vld [vmem:[%s4 + $0x9e0] sm:$0xff]
      %v1001 = vld [vmem:[%s4 + $0x9e8] sm:$0xff]
      %v1002 = vld [vmem:[%s4 + $0x9f0] sm:$0xff]
      %v1003 = vld [vmem:[%s4 + $0x9f8] sm:$0xff]
      %v1004 = vld [vmem:[%s4 + $0xa00] sm:$0xff]
      %v1005 = vld [vmem:[%s4 + $0xa08] sm:$0xff]
      %v1006 = vld [vmem:[%s4 + $0xa10] sm:$0xff]
      %v1007 = vld [vmem:[%s4 + $0xa18] sm:$0xff]
      %v1008 = vld [vmem:[%s4 + $0xa20] sm:$0xff]
      %v1009 = vld [vmem:[%s4 + $0xa28] sm:$0xff]
      %v1010 = vld [vmem:[%s4 + $0xa30] sm:$0xff]
      %v1011 = vld [vmem:[%s4 + $0xa38] sm:$0xff]
      %v1012 = vld [vmem:[%s4 + $0xa40] sm:$0xff]
      %v1013 = vld [vmem:[%s4 + $0xa48] sm:$0xff]
      %v1014 = vld [vmem:[%s4 + $0xa50] sm:$0xff]
      %v1015 = vld [vmem:[%s4 + $0xa58] sm:$0xff]
      %v1016 = vld [vmem:[%s4 + $0xa60] sm:$0xff]
      %v1017 = vld [vmem:[%s4 + $0xa68] sm:$0xff]
      %v1018 = vld [vmem:[%s4 + $0xa70] sm:$0xff]
      %v1019 = vld [vmem:[%s4 + $0xa78] sm:$0xff]
      %v1020 = vld [vmem:[%s4 + $0xa80] sm:$0xff]
      %v1021 = vld [vmem:[%s4 + $0xa88] sm:$0xff]
      %v1022 = vld [vmem:[%s4 + $0xa90] sm:$0xff]
      %v1023 = vld [vmem:[%s4 + $0xa98] sm:$0xff]
      %v1024 = vld [vmem:[%s4 + $0xaa0] sm:$0xff]
      %v1025 = vld [vmem:[%s4 + $0xaa8] sm:$0xff]
      %v1026 = vld [vmem:[%s4 + $0xab0] sm:$0xff]
      %v1027 = vld [vmem:[%s4 + $0xab8] sm:$0xff]
      %v1028 = vld [vmem:[%s4 + $0xac0] sm:$0xff]
      %v1029 = vld [vmem:[%s4 + $0xac8] sm:$0xff]
      %v1030 = vld [vmem:[%s4 + $0xad0] sm:$0xff]
      %v1031 = vld [vmem:[%s4 + $0xad8] sm:$0xff]
      %v1032 = vld [vmem:[%s4 + $0xae0] sm:$0xff]
      %v1033 = vld [vmem:[%s4 + $0xae8] sm:$0xff]
      %v1034 = vld [vmem:[%s4 + $0xaf0] sm:$0xff]
      %v1035 = vld [vmem:[%s4 + $0xaf8] sm:$0xff]
      %v1036 = vld [vmem:[%s4 + $0xb00] sm:$0xff]
      %v1037 = vld [vmem:[%s4 + $0xb08] sm:$0xff]
      %v1038 = vld [vmem:[%s4 + $0xb10] sm:$0xff]
      %v1039 = vld [vmem:[%s4 + $0xb18] sm:$0xff]
      %v1040 = vld [vmem:[%s4 + $0xb20] sm:$0xff]
      %v1041 = vld [vmem:[%s4 + $0xb28] sm:$0xff]
      %v1042 = vld [vmem:[%s4 + $0xb30] sm:$0xff]
      %v1043 = vld [vmem:[%s4 + $0xb38] sm:$0xff]
      %v1044 = vld [vmem:[%s4 + $0xb40] sm:$0xff]
      %v1045 = vld [vmem:[%s4 + $0xb48] sm:$0xff]
      %v1046 = vld [vmem:[%s4 + $0xb50] sm:$0xff]
      %v1047 = vld [vmem:[%s4 + $0xb58] sm:$0xff]
      %v1048 = vld [vmem:[%s4 + $0xb60] sm:$0xff]
      %v1049 = vld [vmem:[%s4 + $0xb68] sm:$0xff]
      %v1050 = vld [vmem:[%s4 + $0xb70] sm:$0xff]
      %v1051 = vld [vmem:[%s4 + $0xb78] sm:$0xff]
      %v1052 = vld [vmem:[%s4 + $0xb80] sm:$0xff]
      %v1053 = vld [vmem:[%s4 + $0xb88] sm:$0xff]
      %v1054 = vld [vmem:[%s4 + $0xb90] sm:$0xff]
      %v1055 = vld [vmem:[%s4 + $0xb98] sm:$0xff]
      %v1056 = vld [vmem:[%s4 + $0xba0] sm:$0xff]
      %v1057 = vld [vmem:[%s4 + $0xba8] sm:$0xff]
      %v1058 = vld [vmem:[%s4 + $0xbb0] sm:$0xff]
      %v1059 = vld [vmem:[%s4 + $0xbb8] sm:$0xff]
      %v1060 = vld [vmem:[%s4 + $0xbc0] sm:$0xff]
      %v1061 = vld [vmem:[%s4 + $0xbc8] sm:$0xff]
      %v1062 = vld [vmem:[%s4 + $0xbd0] sm:$0xff]
      %v1063 = vld [vmem:[%s4 + $0xbd8] sm:$0xff]
      %v1064 = vld [vmem:[%s4 + $0xbe0] sm:$0xff]
      %v1065 = vld [vmem:[%s4 + $0xbe8] sm:$0xff]
      %v1066 = vld [vmem:[%s4 + $0xbf0] sm:$0xff]
      %v1067 = vld [vmem:[%s4 + $0xbf8] sm:$0xff]
      %v1068 = vld [vmem:[%s5] sm:$0xff]
      %v1070 = vperm.slane %v1068, 0
      %v1071 = vperm.slane %v1068, 1
      %v1072 = vperm.slane %v1068, 2
      %v1073 = vperm.slane %v1068, 3
      %v1074 = vperm.slane %v1068, 4
      %v1075 = vperm.slane %v1068, 5
      %v1076 = vperm.slane %v1068, 6
      %v1077 = vperm.slane %v1068, 7
      %1086 = vmatpush.msra.mxu0 %v804
      %1087 = vmatpush.msra.mxu0 %v796
      %1088 = vmatpush.msra.mxu0 %v788
      %1089 = vmatpush.msra.mxu0 %v780
      %1090 = vmatpush.msra.mxu0 %v772
      %1091 = vmatpush.msra.mxu0 %v764
      %1092 = vmatpush.msra.mxu0 %v756
      %1093 = vmatpush.msra.mxu0 %v748
      %1094 = vmatpush.msra.mxu0 %v740
      %1095 = vmatpush.msra.mxu0 %v732
      %1096 = vmatpush.msra.mxu0 %v724
      %1097 = vmatpush.msra.mxu0 %v716
      %1098 = vmatpush.msra.mxu0 %v708
      %1099 = vmatpush.msra.mxu0 %v700
      %1100 = vmatpush.msra.mxu0 %v692
      %1101 = vmatpush.msra.mxu0 %v684
      %1102 = vmatmul.f32.gmra.mxu0 %v679
      %v1103 = vpop.f32.mrf.mxu0
      %v1104 = vadd.f32 %v1070, %v1103
      %1105 = vdwg.mxu0
      %1106 = vmatpush.msra.mxu0 %v932
      %1107 = vmatpush.msra.mxu0 %v924
      %1108 = vmatpush.msra.mxu0 %v916
      %1109 = vmatpush.msra.mxu0 %v908
      %1110 = vmatpush.msra.mxu0 %v900
      %1111 = vmatpush.msra.mxu0 %v892
      %1112 = vmatpush.msra.mxu0 %v884
      %1113 = vmatpush.msra.mxu0 %v876
      %1114 = vmatpush.msra.mxu0 %v868
      %1115 = vmatpush.msra.mxu0 %v860
      %1116 = vmatpush.msra.mxu0 %v852
      %1117 = vmatpush.msra.mxu0 %v844
      %1118 = vmatpush.msra.mxu0 %v836
      %1119 = vmatpush.msra.mxu0 %v828
      %1120 = vmatpush.msra.mxu0 %v820
      %1121 = vmatpush.msra.mxu0 %v812
      %1122 = vmatmul.f32.gmra.mxu0 %v680
      %v1123 = vpop.f32.mrf.mxu0
      %v1124 = vadd.f32 %v1104, %v1123
      %1125 = vdwg.mxu0
      %1126 = vmatpush.msra.mxu0 %v1060
      %1127 = vmatpush.msra.mxu0 %v1052
      %1128 = vmatpush.msra.mxu0 %v1044
      %1129 = vmatpush.msra.mxu0 %v1036
      %1130 = vmatpush.msra.mxu0 %v1028
      %1131 = vmatpush.msra.mxu0 %v1020
      %1132 = vmatpush.msra.mxu0 %v1012
      %1133 = vmatpush.msra.mxu0 %v1004
      %1134 = vmatpush.msra.mxu0 %v996
      %1135 = vmatpush.msra.mxu0 %v988
      %1136 = vmatpush.msra.mxu0 %v980
      %1137 = vmatpush.msra.mxu0 %v972
      %1138 = vmatpush.msra.mxu0 %v964
      %1139 = vmatpush.msra.mxu0 %v956
      %1140 = vmatpush.msra.mxu0 %v948
      %1141 = vmatpush.msra.mxu0 %v940
      %1142 = vmatmul.f32.gmra.mxu0 %v681
      %v1143 = vpop.f32.mrf.mxu0
      %v1144 = vadd.f32 %v1124, %v1143
      %1145 = vdwg.mxu0
      %1146 = vmatpush.msra.mxu0 %v805
      %1147 = vmatpush.msra.mxu0 %v797
      %1148 = vmatpush.msra.mxu0 %v789
      %1149 = vmatpush.msra.mxu0 %v781
      %1150 = vmatpush.msra.mxu0 %v773
      %1151 = vmatpush.msra.mxu0 %v765
      %1152 = vmatpush.msra.mxu0 %v757
      %1153 = vmatpush.msra.mxu0 %v749
      %1154 = vmatpush.msra.mxu0 %v741
      %1155 = vmatpush.msra.mxu0 %v733
      %1156 = vmatpush.msra.mxu0 %v725
      %1157 = vmatpush.msra.mxu0 %v717
      %1158 = vmatpush.msra.mxu0 %v709
      %1159 = vmatpush.msra.mxu0 %v701
      %1160 = vmatpush.msra.mxu0 %v693
      %1161 = vmatpush.msra.mxu0 %v685
      %1162 = vmatmul.f32.gmra.mxu0 %v679
      %v1163 = vpop.f32.mrf.mxu0
      %v1164 = vadd.f32 %v1071, %v1163
      %1165 = vdwg.mxu0
      %1166 = vmatpush.msra.mxu0 %v933
      %1167 = vmatpush.msra.mxu0 %v925
      %1168 = vmatpush.msra.mxu0 %v917
      %1169 = vmatpush.msra.mxu0 %v909
      %1170 = vmatpush.msra.mxu0 %v901
      %1171 = vmatpush.msra.mxu0 %v893
      %1172 = vmatpush.msra.mxu0 %v885
      %1173 = vmatpush.msra.mxu0 %v877
      %1174 = vmatpush.msra.mxu0 %v869
      %1175 = vmatpush.msra.mxu0 %v861
      %1176 = vmatpush.msra.mxu0 %v853
      %1177 = vmatpush.msra.mxu0 %v845
      %1178 = vmatpush.msra.mxu0 %v837
      %1179 = vmatpush.msra.mxu0 %v829
      %1180 = vmatpush.msra.mxu0 %v821
      %1181 = vmatpush.msra.mxu0 %v813
      %1182 = vmatmul.f32.gmra.mxu0 %v680
      %v1183 = vpop.f32.mrf.mxu0
      %v1184 = vadd.f32 %v1164, %v1183
      %1185 = vdwg.mxu0
      %1186 = vmatpush.msra.mxu0 %v1061
      %1187 = vmatpush.msra.mxu0 %v1053
      %1188 = vmatpush.msra.mxu0 %v1045
      %1189 = vmatpush.msra.mxu0 %v1037
      %1190 = vmatpush.msra.mxu0 %v1029
      %1191 = vmatpush.msra.mxu0 %v1021
      %1192 = vmatpush.msra.mxu0 %v1013
      %1193 = vmatpush.msra.mxu0 %v1005
      %1194 = vmatpush.msra.mxu0 %v997
      %1195 = vmatpush.msra.mxu0 %v989
      %1196 = vmatpush.msra.mxu0 %v981
      %1197 = vmatpush.msra.mxu0 %v973
      %1198 = vmatpush.msra.mxu0 %v965
      %1199 = vmatpush.msra.mxu0 %v957
      %1200 = vmatpush.msra.mxu0 %v949
      %1201 = vmatpush.msra.mxu0 %v941
      %1202 = vmatmul.f32.gmra.mxu0 %v681
      %v1203 = vpop.f32.mrf.mxu0
      %v1204 = vadd.f32 %v1184, %v1203
      %1205 = vdwg.mxu0
      %1206 = vmatpush.msra.mxu0 %v806
      %1207 = vmatpush.msra.mxu0 %v798
      %1208 = vmatpush.msra.mxu0 %v790
      %1209 = vmatpush.msra.mxu0 %v782
      %1210 = vmatpush.msra.mxu0 %v774
      %1211 = vmatpush.msra.mxu0 %v766
      %1212 = vmatpush.msra.mxu0 %v758
      %1213 = vmatpush.msra.mxu0 %v750
      %1214 = vmatpush.msra.mxu0 %v742
      %1215 = vmatpush.msra.mxu0 %v734
      %1216 = vmatpush.msra.mxu0 %v726
      %1217 = vmatpush.msra.mxu0 %v718
      %1218 = vmatpush.msra.mxu0 %v710
      %1219 = vmatpush.msra.mxu0 %v702
      %1220 = vmatpush.msra.mxu0 %v694
      %1221 = vmatpush.msra.mxu0 %v686
      %1222 = vmatmul.f32.gmra.mxu0 %v679
      %v1223 = vpop.f32.mrf.mxu0
      %v1224 = vadd.f32 %v1072, %v1223
      %1225 = vdwg.mxu0
      %1226 = vmatpush.msra.mxu0 %v934
      %1227 = vmatpush.msra.mxu0 %v926
      %1228 = vmatpush.msra.mxu0 %v918
      %1229 = vmatpush.msra.mxu0 %v910
      %1230 = vmatpush.msra.mxu0 %v902
      %1231 = vmatpush.msra.mxu0 %v894
      %1232 = vmatpush.msra.mxu0 %v886
      %1233 = vmatpush.msra.mxu0 %v878
      %1234 = vmatpush.msra.mxu0 %v870
      %1235 = vmatpush.msra.mxu0 %v862
      %1236 = vmatpush.msra.mxu0 %v854
      %1237 = vmatpush.msra.mxu0 %v846
      %1238 = vmatpush.msra.mxu0 %v838
      %1239 = vmatpush.msra.mxu0 %v830
      %1240 = vmatpush.msra.mxu0 %v822
      %1241 = vmatpush.msra.mxu0 %v814
      %1242 = vmatmul.f32.gmra.mxu0 %v680
      %v1243 = vpop.f32.mrf.mxu0
      %v1244 = vadd.f32 %v1224, %v1243
      %1245 = vdwg.mxu0
      %1246 = vmatpush.msra.mxu0 %v1062
      %1247 = vmatpush.msra.mxu0 %v1054
      %1248 = vmatpush.msra.mxu0 %v1046
      %1249 = vmatpush.msra.mxu0 %v1038
      %1250 = vmatpush.msra.mxu0 %v1030
      %1251 = vmatpush.msra.mxu0 %v1022
      %1252 = vmatpush.msra.mxu0 %v1014
      %1253 = vmatpush.msra.mxu0 %v1006
      %1254 = vmatpush.msra.mxu0 %v998
      %1255 = vmatpush.msra.mxu0 %v990
      %1256 = vmatpush.msra.mxu0 %v982
      %1257 = vmatpush.msra.mxu0 %v974
      %1258 = vmatpush.msra.mxu0 %v966
      %1259 = vmatpush.msra.mxu0 %v958
      %1260 = vmatpush.msra.mxu0 %v950
      %1261 = vmatpush.msra.mxu0 %v942
      %1262 = vmatmul.f32.gmra.mxu0 %v681
      %v1263 = vpop.f32.mrf.mxu0
      %v1264 = vadd.f32 %v1244, %v1263
      %1265 = vdwg.mxu0
      %1266 = vmatpush.msra.mxu0 %v807
      %1267 = vmatpush.msra.mxu0 %v799
      %1268 = vmatpush.msra.mxu0 %v791
      %1269 = vmatpush.msra.mxu0 %v783
      %1270 = vmatpush.msra.mxu0 %v775
      %1271 = vmatpush.msra.mxu0 %v767
      %1272 = vmatpush.msra.mxu0 %v759
      %1273 = vmatpush.msra.mxu0 %v751
      %1274 = vmatpush.msra.mxu0 %v743
      %1275 = vmatpush.msra.mxu0 %v735
      %1276 = vmatpush.msra.mxu0 %v727
      %1277 = vmatpush.msra.mxu0 %v719
      %1278 = vmatpush.msra.mxu0 %v711
      %1279 = vmatpush.msra.mxu0 %v703
      %1280 = vmatpush.msra.mxu0 %v695
      %1281 = vmatpush.msra.mxu0 %v687
      %1282 = vmatmul.f32.gmra.mxu0 %v679
      %v1283 = vpop.f32.mrf.mxu0
      %v1284 = vadd.f32 %v1073, %v1283
      %1285 = vdwg.mxu0
      %1286 = vmatpush.msra.mxu0 %v935
      %1287 = vmatpush.msra.mxu0 %v927
      %1288 = vmatpush.msra.mxu0 %v919
      %1289 = vmatpush.msra.mxu0 %v911
      %1290 = vmatpush.msra.mxu0 %v903
      %1291 = vmatpush.msra.mxu0 %v895
      %1292 = vmatpush.msra.mxu0 %v887
      %1293 = vmatpush.msra.mxu0 %v879
      %1294 = vmatpush.msra.mxu0 %v871
      %1295 = vmatpush.msra.mxu0 %v863
      %1296 = vmatpush.msra.mxu0 %v855
      %1297 = vmatpush.msra.mxu0 %v847
      %1298 = vmatpush.msra.mxu0 %v839
      %1299 = vmatpush.msra.mxu0 %v831
      %1300 = vmatpush.msra.mxu0 %v823
      %1301 = vmatpush.msra.mxu0 %v815
      %1302 = vmatmul.f32.gmra.mxu0 %v680
      %v1303 = vpop.f32.mrf.mxu0
      %v1304 = vadd.f32 %v1284, %v1303
      %1305 = vdwg.mxu0
      %1306 = vmatpush.msra.mxu0 %v1063
      %1307 = vmatpush.msra.mxu0 %v1055
      %1308 = vmatpush.msra.mxu0 %v1047
      %1309 = vmatpush.msra.mxu0 %v1039
      %1310 = vmatpush.msra.mxu0 %v1031
      %1311 = vmatpush.msra.mxu0 %v1023
      %1312 = vmatpush.msra.mxu0 %v1015
      %1313 = vmatpush.msra.mxu0 %v1007
      %1314 = vmatpush.msra.mxu0 %v999
      %1315 = vmatpush.msra.mxu0 %v991
      %1316 = vmatpush.msra.mxu0 %v983
      %1317 = vmatpush.msra.mxu0 %v975
      %1318 = vmatpush.msra.mxu0 %v967
      %1319 = vmatpush.msra.mxu0 %v959
      %1320 = vmatpush.msra.mxu0 %v951
      %1321 = vmatpush.msra.mxu0 %v943
      %1322 = vmatmul.f32.gmra.mxu0 %v681
      %v1323 = vpop.f32.mrf.mxu0
      %v1324 = vadd.f32 %v1304, %v1323
      %1325 = vdwg.mxu0
      %1326 = vmatpush.msra.mxu0 %v808
      %1327 = vmatpush.msra.mxu0 %v800
      %1328 = vmatpush.msra.mxu0 %v792
      %1329 = vmatpush.msra.mxu0 %v784
      %1330 = vmatpush.msra.mxu0 %v776
      %1331 = vmatpush.msra.mxu0 %v768
      %1332 = vmatpush.msra.mxu0 %v760
      %1333 = vmatpush.msra.mxu0 %v752
      %1334 = vmatpush.msra.mxu0 %v744
      %1335 = vmatpush.msra.mxu0 %v736
      %1336 = vmatpush.msra.mxu0 %v728
      %1337 = vmatpush.msra.mxu0 %v720
      %1338 = vmatpush.msra.mxu0 %v712
      %1339 = vmatpush.msra.mxu0 %v704
      %1340 = vmatpush.msra.mxu0 %v696
      %1341 = vmatpush.msra.mxu0 %v688
      %1342 = vmatmul.f32.gmra.mxu0 %v679
      %v1343 = vpop.f32.mrf.mxu0
      %v1344 = vadd.f32 %v1074, %v1343
      %1345 = vdwg.mxu0
      %1346 = vmatpush.msra.mxu0 %v936
      %1347 = vmatpush.msra.mxu0 %v928
      %1348 = vmatpush.msra.mxu0 %v920
      %1349 = vmatpush.msra.mxu0 %v912
      %1350 = vmatpush.msra.mxu0 %v904
      %1351 = vmatpush.msra.mxu0 %v896
      %1352 = vmatpush.msra.mxu0 %v888
      %1353 = vmatpush.msra.mxu0 %v880
      %1354 = vmatpush.msra.mxu0 %v872
      %1355 = vmatpush.msra.mxu0 %v864
      %1356 = vmatpush.msra.mxu0 %v856
      %1357 = vmatpush.msra.mxu0 %v848
      %1358 = vmatpush.msra.mxu0 %v840
      %1359 = vmatpush.msra.mxu0 %v832
      %1360 = vmatpush.msra.mxu0 %v824
      %1361 = vmatpush.msra.mxu0 %v816
      %1362 = vmatmul.f32.gmra.mxu0 %v680
      %v1363 = vpop.f32.mrf.mxu0
      %v1364 = vadd.f32 %v1344, %v1363
      %1365 = vdwg.mxu0
      %1366 = vmatpush.msra.mxu0 %v1064
      %1367 = vmatpush.msra.mxu0 %v1056
      %1368 = vmatpush.msra.mxu0 %v1048
      %1369 = vmatpush.msra.mxu0 %v1040
      %1370 = vmatpush.msra.mxu0 %v1032
      %1371 = vmatpush.msra.mxu0 %v1024
      %1372 = vmatpush.msra.mxu0 %v1016
      %1373 = vmatpush.msra.mxu0 %v1008
      %1374 = vmatpush.msra.mxu0 %v1000
      %1375 = vmatpush.msra.mxu0 %v992
      %1376 = vmatpush.msra.mxu0 %v984
      %1377 = vmatpush.msra.mxu0 %v976
      %1378 = vmatpush.msra.mxu0 %v968
      %1379 = vmatpush.msra.mxu0 %v960
      %1380 = vmatpush.msra.mxu0 %v952
      %1381 = vmatpush.msra.mxu0 %v944
      %1382 = vmatmul.f32.gmra.mxu0 %v681
      %v1383 = vpop.f32.mrf.mxu0
      %v1384 = vadd.f32 %v1364, %v1383
      %1385 = vdwg.mxu0
      %1386 = vmatpush.msra.mxu0 %v809
      %1387 = vmatpush.msra.mxu0 %v801
      %1388 = vmatpush.msra.mxu0 %v793
      %1389 = vmatpush.msra.mxu0 %v785
      %1390 = vmatpush.msra.mxu0 %v777
      %1391 = vmatpush.msra.mxu0 %v769
      %1392 = vmatpush.msra.mxu0 %v761
      %1393 = vmatpush.msra.mxu0 %v753
      %1394 = vmatpush.msra.mxu0 %v745
      %1395 = vmatpush.msra.mxu0 %v737
      %1396 = vmatpush.msra.mxu0 %v729
      %1397 = vmatpush.msra.mxu0 %v721
      %1398 = vmatpush.msra.mxu0 %v713
      %1399 = vmatpush.msra.mxu0 %v705
      %1400 = vmatpush.msra.mxu0 %v697
      %1401 = vmatpush.msra.mxu0 %v689
      %1402 = vmatmul.f32.gmra.mxu0 %v679
      %v1403 = vpop.f32.mrf.mxu0
      %v1404 = vadd.f32 %v1075, %v1403
      %1405 = vdwg.mxu0
      %1406 = vmatpush.msra.mxu0 %v937
      %1407 = vmatpush.msra.mxu0 %v929
      %1408 = vmatpush.msra.mxu0 %v921
      %1409 = vmatpush.msra.mxu0 %v913
      %1410 = vmatpush.msra.mxu0 %v905
      %1411 = vmatpush.msra.mxu0 %v897
      %1412 = vmatpush.msra.mxu0 %v889
      %1413 = vmatpush.msra.mxu0 %v881
      %1414 = vmatpush.msra.mxu0 %v873
      %1415 = vmatpush.msra.mxu0 %v865
      %1416 = vmatpush.msra.mxu0 %v857
      %1417 = vmatpush.msra.mxu0 %v849
      %1418 = vmatpush.msra.mxu0 %v841
      %1419 = vmatpush.msra.mxu0 %v833
      %1420 = vmatpush.msra.mxu0 %v825
      %1421 = vmatpush.msra.mxu0 %v817
      %1422 = vmatmul.f32.gmra.mxu0 %v680
      %v1423 = vpop.f32.mrf.mxu0
      %v1424 = vadd.f32 %v1404, %v1423
      %1425 = vdwg.mxu0
      %1426 = vmatpush.msra.mxu0 %v1065
      %1427 = vmatpush.msra.mxu0 %v1057
      %1428 = vmatpush.msra.mxu0 %v1049
      %1429 = vmatpush.msra.mxu0 %v1041
      %1430 = vmatpush.msra.mxu0 %v1033
      %1431 = vmatpush.msra.mxu0 %v1025
      %1432 = vmatpush.msra.mxu0 %v1017
      %1433 = vmatpush.msra.mxu0 %v1009
      %1434 = vmatpush.msra.mxu0 %v1001
      %1435 = vmatpush.msra.mxu0 %v993
      %1436 = vmatpush.msra.mxu0 %v985
      %1437 = vmatpush.msra.mxu0 %v977
      %1438 = vmatpush.msra.mxu0 %v969
      %1439 = vmatpush.msra.mxu0 %v961
      %1440 = vmatpush.msra.mxu0 %v953
      %1441 = vmatpush.msra.mxu0 %v945
      %1442 = vmatmul.f32.gmra.mxu0 %v681
      %v1443 = vpop.f32.mrf.mxu0
      %v1444 = vadd.f32 %v1424, %v1443
      %1445 = vdwg.mxu0
      %1446 = vmatpush.msra.mxu0 %v810
      %1447 = vmatpush.msra.mxu0 %v802
      %1448 = vmatpush.msra.mxu0 %v794
      %1449 = vmatpush.msra.mxu0 %v786
      %1450 = vmatpush.msra.mxu0 %v778
      %1451 = vmatpush.msra.mxu0 %v770
      %1452 = vmatpush.msra.mxu0 %v762
      %1453 = vmatpush.msra.mxu0 %v754
      %1454 = vmatpush.msra.mxu0 %v746
      %1455 = vmatpush.msra.mxu0 %v738
      %1456 = vmatpush.msra.mxu0 %v730
      %1457 = vmatpush.msra.mxu0 %v722
      %1458 = vmatpush.msra.mxu0 %v714
      %1459 = vmatpush.msra.mxu0 %v706
      %1460 = vmatpush.msra.mxu0 %v698
      %1461 = vmatpush.msra.mxu0 %v690
      %1462 = vmatmul.f32.gmra.mxu0 %v679
      %v1463 = vpop.f32.mrf.mxu0
      %v1464 = vadd.f32 %v1076, %v1463
      %1465 = vdwg.mxu0
      %1466 = vmatpush.msra.mxu0 %v938
      %1467 = vmatpush.msra.mxu0 %v930
      %1468 = vmatpush.msra.mxu0 %v922
      %1469 = vmatpush.msra.mxu0 %v914
      %1470 = vmatpush.msra.mxu0 %v906
      %1471 = vmatpush.msra.mxu0 %v898
      %1472 = vmatpush.msra.mxu0 %v890
      %1473 = vmatpush.msra.mxu0 %v882
      %1474 = vmatpush.msra.mxu0 %v874
      %1475 = vmatpush.msra.mxu0 %v866
      %1476 = vmatpush.msra.mxu0 %v858
      %1477 = vmatpush.msra.mxu0 %v850
      %1478 = vmatpush.msra.mxu0 %v842
      %1479 = vmatpush.msra.mxu0 %v834
      %1480 = vmatpush.msra.mxu0 %v826
      %1481 = vmatpush.msra.mxu0 %v818
      %1482 = vmatmul.f32.gmra.mxu0 %v680
      %v1483 = vpop.f32.mrf.mxu0
      %v1484 = vadd.f32 %v1464, %v1483
      %1485 = vdwg.mxu0
      %1486 = vmatpush.msra.mxu0 %v1066
      %1487 = vmatpush.msra.mxu0 %v1058
      %1488 = vmatpush.msra.mxu0 %v1050
      %1489 = vmatpush.msra.mxu0 %v1042
      %1490 = vmatpush.msra.mxu0 %v1034
      %1491 = vmatpush.msra.mxu0 %v1026
      %1492 = vmatpush.msra.mxu0 %v1018
      %1493 = vmatpush.msra.mxu0 %v1010
      %1494 = vmatpush.msra.mxu0 %v1002
      %1495 = vmatpush.msra.mxu0 %v994
      %1496 = vmatpush.msra.mxu0 %v986
      %1497 = vmatpush.msra.mxu0 %v978
      %1498 = vmatpush.msra.mxu0 %v970
      %1499 = vmatpush.msra.mxu0 %v962
      %1500 = vmatpush.msra.mxu0 %v954
      %1501 = vmatpush.msra.mxu0 %v946
      %1502 = vmatmul.f32.gmra.mxu0 %v681
      %v1503 = vpop.f32.mrf.mxu0
      %v1504 = vadd.f32 %v1484, %v1503
      %1505 = vdwg.mxu0
      %1506 = vmatpush.msra.mxu0 %v811
      %1507 = vmatpush.msra.mxu0 %v803
      %1508 = vmatpush.msra.mxu0 %v795
      %1509 = vmatpush.msra.mxu0 %v787
      %1510 = vmatpush.msra.mxu0 %v779
      %1511 = vmatpush.msra.mxu0 %v771
      %1512 = vmatpush.msra.mxu0 %v763
      %1513 = vmatpush.msra.mxu0 %v755
      %1514 = vmatpush.msra.mxu0 %v747
      %1515 = vmatpush.msra.mxu0 %v739
      %1516 = vmatpush.msra.mxu0 %v731
      %1517 = vmatpush.msra.mxu0 %v723
      %1518 = vmatpush.msra.mxu0 %v715
      %1519 = vmatpush.msra.mxu0 %v707
      %1520 = vmatpush.msra.mxu0 %v699
      %1521 = vmatpush.msra.mxu0 %v691
      %1522 = vmatmul.f32.gmra.mxu0 %v679
      %v1523 = vpop.f32.mrf.mxu0
      %v1524 = vadd.f32 %v1077, %v1523
      %1525 = vdwg.mxu0
      %1526 = vmatpush.msra.mxu0 %v939
      %1527 = vmatpush.msra.mxu0 %v931
      %1528 = vmatpush.msra.mxu0 %v923
      %1529 = vmatpush.msra.mxu0 %v915
      %1530 = vmatpush.msra.mxu0 %v907
      %1531 = vmatpush.msra.mxu0 %v899
      %1532 = vmatpush.msra.mxu0 %v891
      %1533 = vmatpush.msra.mxu0 %v883
      %1534 = vmatpush.msra.mxu0 %v875
      %1535 = vmatpush.msra.mxu0 %v867
      %1536 = vmatpush.msra.mxu0 %v859
      %1537 = vmatpush.msra.mxu0 %v851
      %1538 = vmatpush.msra.mxu0 %v843
      %1539 = vmatpush.msra.mxu0 %v835
      %1540 = vmatpush.msra.mxu0 %v827
      %1541 = vmatpush.msra.mxu0 %v819
      %1542 = vmatmul.f32.gmra.mxu0 %v680
      %v1543 = vpop.f32.mrf.mxu0
      %v1544 = vadd.f32 %v1524, %v1543
      %1545 = vdwg.mxu0
      %1546 = vmatpush.msra.mxu0 %v1067
      %1547 = vmatpush.msra.mxu0 %v1059
      %1548 = vmatpush.msra.mxu0 %v1051
      %1549 = vmatpush.msra.mxu0 %v1043
      %1550 = vmatpush.msra.mxu0 %v1035
      %1551 = vmatpush.msra.mxu0 %v1027
      %1552 = vmatpush.msra.mxu0 %v1019
      %1553 = vmatpush.msra.mxu0 %v1011
      %1554 = vmatpush.msra.mxu0 %v1003
      %1555 = vmatpush.msra.mxu0 %v995
      %1556 = vmatpush.msra.mxu0 %v987
      %1557 = vmatpush.msra.mxu0 %v979
      %1558 = vmatpush.msra.mxu0 %v971
      %1559 = vmatpush.msra.mxu0 %v963
      %1560 = vmatpush.msra.mxu0 %v955
      %1561 = vmatpush.msra.mxu0 %v947
      %1562 = vmatmul.f32.gmra.mxu0 %v681
      %v1563 = vpop.f32.mrf.mxu0
      %v1564 = vadd.f32 %v1544, %v1563
      %1565 = vdwg.mxu0
      %v1566 = vsub.f32 0.0, %v1144
      %v1567 = vsub.f32 0.0, %v1204
      %v1568 = vmul.f32 %v1566, 1.442695
      %v1569 = vpow.pop %v1568
      %v1570 = vmul.f32 %v1567, 1.442695
      %v1571 = vpow.pop %v1570
      %v1572 = vadd.f32 %v1569, 1.0
      %v1573 = vadd.f32 %v1571, 1.0
      %v1574 = vrcp.pop %v1572
      %v1575 = vrcp.pop %v1573
      %v1576 = vsub.f32 0.0, %v1264
      %v1577 = vsub.f32 0.0, %v1324
      %v1578 = vmul.f32 %v1576, 1.442695
      %v1579 = vpow.pop %v1578
      %v1580 = vmul.f32 %v1577, 1.442695
      %v1581 = vpow.pop %v1580
      %v1582 = vadd.f32 %v1579, 1.0
      %v1583 = vadd.f32 %v1581, 1.0
      %v1584 = vrcp.pop %v1582
      %v1585 = vrcp.pop %v1583
      %v1586 = vtanh.pop %v1384
      %v1587 = vtanh.pop %v1444
      %v1588 = vsub.f32 0.0, %v1504
      %v1589 = vsub.f32 0.0, %v1564
      %v1590 = vmul.f32 %v1588, 1.442695
      %v1591 = vpow.pop %v1590
      %v1592 = vmul.f32 %v1589, 1.442695
      %v1593 = vpow.pop %v1592
      %v1594 = vadd.f32 %v1591, 1.0
      %v1595 = vadd.f32 %v1593, 1.0
      %v1596 = vrcp.pop %v1594
      %v1597 = vrcp.pop %v1595
      %v1598 = vmul.f32 %v1584, %v682
      %v1599 = vmul.f32 %v1585, %v683
      %v1600 = vmul.f32 %v1574, %v1586
      %v1601 = vmul.f32 %v1575, %v1587
      %v1602 = vadd.f32 %v1598, %v1600
      %v1603 = vadd.f32 %v1599, %v1601
      %v1604 = vtanh.pop %v1602
      %v1605 = vtanh.pop %v1603
      %v1606 = vmul.f32 %v1596, %v1604
      %v1607 = vmul.f32 %v1597, %v1605
      %v1608 = vld [vmem:[#allocation7] sm:$0xff]
      %v1609 = vld [vmem:[#allocation8] sm:$0xff]
      %v1610 = vld [vmem:[%s6] sm:$0xff]
      %v1611 = vld [vmem:[%s6 + $0x8] sm:$0xff]
      %v1612 = vld [vmem:[%s6 + $0x10] sm:$0xff]
      %v1613 = vld [vmem:[%s6 + $0x18] sm:$0xff]
      %v1614 = vld [vmem:[%s6 + $0x20] sm:$0xff]
      %v1615 = vld [vmem:[%s6 + $0x28] sm:$0xff]
      %v1616 = vld [vmem:[%s6 + $0x30] sm:$0xff]
      %v1617 = vld [vmem:[%s6 + $0x38] sm:$0xff]
      %v1618 = vld [vmem:[%s6 + $0x40] sm:$0xff]
      %v1619 = vld [vmem:[%s6 + $0x48] sm:$0xff]
      %v1620 = vld [vmem:[%s6 + $0x50] sm:$0xff]
      %v1621 = vld [vmem:[%s6 + $0x58] sm:$0xff]
      %v1622 = vld [vmem:[%s6 + $0x60] sm:$0xff]
      %v1623 = vld [vmem:[%s6 + $0x68] sm:$0xff]
      %v1624 = vld [vmem:[%s6 + $0x70] sm:$0xff]
      %v1625 = vld [vmem:[%s6 + $0x78] sm:$0xff]
      %v1626 = vld [vmem:[%s6 + $0x80] sm:$0xff]
      %v1627 = vld [vmem:[%s6 + $0x88] sm:$0xff]
      %v1628 = vld [vmem:[%s6 + $0x90] sm:$0xff]
      %v1629 = vld [vmem:[%s6 + $0x98] sm:$0xff]
      %v1630 = vld [vmem:[%s6 + $0xa0] sm:$0xff]
      %v1631 = vld [vmem:[%s6 + $0xa8] sm:$0xff]
      %v1632 = vld [vmem:[%s6 + $0xb0] sm:$0xff]
      %v1633 = vld [vmem:[%s6 + $0xb8] sm:$0xff]
      %v1634 = vld [vmem:[%s6 + $0xc0] sm:$0xff]
      %v1635 = vld [vmem:[%s6 + $0xc8] sm:$0xff]
      %v1636 = vld [vmem:[%s6 + $0xd0] sm:$0xff]
      %v1637 = vld [vmem:[%s6 + $0xd8] sm:$0xff]
      %v1638 = vld [vmem:[%s6 + $0xe0] sm:$0xff]
      %v1639 = vld [vmem:[%s6 + $0xe8] sm:$0xff]
      %v1640 = vld [vmem:[%s6 + $0xf0] sm:$0xff]
      %v1641 = vld [vmem:[%s6 + $0xf8] sm:$0xff]
      %v1642 = vld [vmem:[%s6 + $0x100] sm:$0xff]
      %v1643 = vld [vmem:[%s6 + $0x108] sm:$0xff]
      %v1644 = vld [vmem:[%s6 + $0x110] sm:$0xff]
      %v1645 = vld [vmem:[%s6 + $0x118] sm:$0xff]
      %v1646 = vld [vmem:[%s6 + $0x120] sm:$0xff]
      %v1647 = vld [vmem:[%s6 + $0x128] sm:$0xff]
      %v1648 = vld [vmem:[%s6 + $0x130] sm:$0xff]
      %v1649 = vld [vmem:[%s6 + $0x138] sm:$0xff]
      %v1650 = vld [vmem:[%s6 + $0x140] sm:$0xff]
      %v1651 = vld [vmem:[%s6 + $0x148] sm:$0xff]
      %v1652 = vld [vmem:[%s6 + $0x150] sm:$0xff]
      %v1653 = vld [vmem:[%s6 + $0x158] sm:$0xff]
      %v1654 = vld [vmem:[%s6 + $0x160] sm:$0xff]
      %v1655 = vld [vmem:[%s6 + $0x168] sm:$0xff]
      %v1656 = vld [vmem:[%s6 + $0x170] sm:$0xff]
      %v1657 = vld [vmem:[%s6 + $0x178] sm:$0xff]
      %v1658 = vld [vmem:[%s6 + $0x180] sm:$0xff]
      %v1659 = vld [vmem:[%s6 + $0x188] sm:$0xff]
      %v1660 = vld [vmem:[%s6 + $0x190] sm:$0xff]
      %v1661 = vld [vmem:[%s6 + $0x198] sm:$0xff]
      %v1662 = vld [vmem:[%s6 + $0x1a0] sm:$0xff]
      %v1663 = vld [vmem:[%s6 + $0x1a8] sm:$0xff]
      %v1664 = vld [vmem:[%s6 + $0x1b0] sm:$0xff]
      %v1665 = vld [vmem:[%s6 + $0x1b8] sm:$0xff]
      %v1666 = vld [vmem:[%s6 + $0x1c0] sm:$0xff]
      %v1667 = vld [vmem:[%s6 + $0x1c8] sm:$0xff]
      %v1668 = vld [vmem:[%s6 + $0x1d0] sm:$0xff]
      %v1669 = vld [vmem:[%s6 + $0x1d8] sm:$0xff]
      %v1670 = vld [vmem:[%s6 + $0x1e0] sm:$0xff]
      %v1671 = vld [vmem:[%s6 + $0x1e8] sm:$0xff]
      %v1672 = vld [vmem:[%s6 + $0x1f0] sm:$0xff]
      %v1673 = vld [vmem:[%s6 + $0x1f8] sm:$0xff]
      %v1674 = vld [vmem:[%s6 + $0x200] sm:$0xff]
      %v1675 = vld [vmem:[%s6 + $0x208] sm:$0xff]
      %v1676 = vld [vmem:[%s6 + $0x210] sm:$0xff]
      %v1677 = vld [vmem:[%s6 + $0x218] sm:$0xff]
      %v1678 = vld [vmem:[%s6 + $0x220] sm:$0xff]
      %v1679 = vld [vmem:[%s6 + $0x228] sm:$0xff]
      %v1680 = vld [vmem:[%s6 + $0x230] sm:$0xff]
      %v1681 = vld [vmem:[%s6 + $0x238] sm:$0xff]
      %v1682 = vld [vmem:[%s6 + $0x240] sm:$0xff]
      %v1683 = vld [vmem:[%s6 + $0x248] sm:$0xff]
      %v1684 = vld [vmem:[%s6 + $0x250] sm:$0xff]
      %v1685 = vld [vmem:[%s6 + $0x258] sm:$0xff]
      %v1686 = vld [vmem:[%s6 + $0x260] sm:$0xff]
      %v1687 = vld [vmem:[%s6 + $0x268] sm:$0xff]
      %v1688 = vld [vmem:[%s6 + $0x270] sm:$0xff]
      %v1689 = vld [vmem:[%s6 + $0x278] sm:$0xff]
      %v1690 = vld [vmem:[%s6 + $0x280] sm:$0xff]
      %v1691 = vld [vmem:[%s6 + $0x288] sm:$0xff]
      %v1692 = vld [vmem:[%s6 + $0x290] sm:$0xff]
      %v1693 = vld [vmem:[%s6 + $0x298] sm:$0xff]
      %v1694 = vld [vmem:[%s6 + $0x2a0] sm:$0xff]
      %v1695 = vld [vmem:[%s6 + $0x2a8] sm:$0xff]
      %v1696 = vld [vmem:[%s6 + $0x2b0] sm:$0xff]
      %v1697 = vld [vmem:[%s6 + $0x2b8] sm:$0xff]
      %v1698 = vld [vmem:[%s6 + $0x2c0] sm:$0xff]
      %v1699 = vld [vmem:[%s6 + $0x2c8] sm:$0xff]
      %v1700 = vld [vmem:[%s6 + $0x2d0] sm:$0xff]
      %v1701 = vld [vmem:[%s6 + $0x2d8] sm:$0xff]
      %v1702 = vld [vmem:[%s6 + $0x2e0] sm:$0xff]
      %v1703 = vld [vmem:[%s6 + $0x2e8] sm:$0xff]
      %v1704 = vld [vmem:[%s6 + $0x2f0] sm:$0xff]
      %v1705 = vld [vmem:[%s6 + $0x2f8] sm:$0xff]
      %v1706 = vld [vmem:[%s6 + $0x300] sm:$0xff]
      %v1707 = vld [vmem:[%s6 + $0x308] sm:$0xff]
      %v1708 = vld [vmem:[%s6 + $0x310] sm:$0xff]
      %v1709 = vld [vmem:[%s6 + $0x318] sm:$0xff]
      %v1710 = vld [vmem:[%s6 + $0x320] sm:$0xff]
      %v1711 = vld [vmem:[%s6 + $0x328] sm:$0xff]
      %v1712 = vld [vmem:[%s6 + $0x330] sm:$0xff]
      %v1713 = vld [vmem:[%s6 + $0x338] sm:$0xff]
      %v1714 = vld [vmem:[%s6 + $0x340] sm:$0xff]
      %v1715 = vld [vmem:[%s6 + $0x348] sm:$0xff]
      %v1716 = vld [vmem:[%s6 + $0x350] sm:$0xff]
      %v1717 = vld [vmem:[%s6 + $0x358] sm:$0xff]
      %v1718 = vld [vmem:[%s6 + $0x360] sm:$0xff]
      %v1719 = vld [vmem:[%s6 + $0x368] sm:$0xff]
      %v1720 = vld [vmem:[%s6 + $0x370] sm:$0xff]
      %v1721 = vld [vmem:[%s6 + $0x378] sm:$0xff]
      %v1722 = vld [vmem:[%s6 + $0x380] sm:$0xff]
      %v1723 = vld [vmem:[%s6 + $0x388] sm:$0xff]
      %v1724 = vld [vmem:[%s6 + $0x390] sm:$0xff]
      %v1725 = vld [vmem:[%s6 + $0x398] sm:$0xff]
      %v1726 = vld [vmem:[%s6 + $0x3a0] sm:$0xff]
      %v1727 = vld [vmem:[%s6 + $0x3a8] sm:$0xff]
      %v1728 = vld [vmem:[%s6 + $0x3b0] sm:$0xff]
      %v1729 = vld [vmem:[%s6 + $0x3b8] sm:$0xff]
      %v1730 = vld [vmem:[%s6 + $0x3c0] sm:$0xff]
      %v1731 = vld [vmem:[%s6 + $0x3c8] sm:$0xff]
      %v1732 = vld [vmem:[%s6 + $0x3d0] sm:$0xff]
      %v1733 = vld [vmem:[%s6 + $0x3d8] sm:$0xff]
      %v1734 = vld [vmem:[%s6 + $0x3e0] sm:$0xff]
      %v1735 = vld [vmem:[%s6 + $0x3e8] sm:$0xff]
      %v1736 = vld [vmem:[%s6 + $0x3f0] sm:$0xff]
      %v1737 = vld [vmem:[%s6 + $0x3f8] sm:$0xff]
      %v1738 = vld [vmem:[%s6 + $0x400] sm:$0xff]
      %v1739 = vld [vmem:[%s6 + $0x408] sm:$0xff]
      %v1740 = vld [vmem:[%s6 + $0x410] sm:$0xff]
      %v1741 = vld [vmem:[%s6 + $0x418] sm:$0xff]
      %v1742 = vld [vmem:[%s6 + $0x420] sm:$0xff]
      %v1743 = vld [vmem:[%s6 + $0x428] sm:$0xff]
      %v1744 = vld [vmem:[%s6 + $0x430] sm:$0xff]
      %v1745 = vld [vmem:[%s6 + $0x438] sm:$0xff]
      %v1746 = vld [vmem:[%s6 + $0x440] sm:$0xff]
      %v1747 = vld [vmem:[%s6 + $0x448] sm:$0xff]
      %v1748 = vld [vmem:[%s6 + $0x450] sm:$0xff]
      %v1749 = vld [vmem:[%s6 + $0x458] sm:$0xff]
      %v1750 = vld [vmem:[%s6 + $0x460] sm:$0xff]
      %v1751 = vld [vmem:[%s6 + $0x468] sm:$0xff]
      %v1752 = vld [vmem:[%s6 + $0x470] sm:$0xff]
      %v1753 = vld [vmem:[%s6 + $0x478] sm:$0xff]
      %v1754 = vld [vmem:[%s6 + $0x480] sm:$0xff]
      %v1755 = vld [vmem:[%s6 + $0x488] sm:$0xff]
      %v1756 = vld [vmem:[%s6 + $0x490] sm:$0xff]
      %v1757 = vld [vmem:[%s6 + $0x498] sm:$0xff]
      %v1758 = vld [vmem:[%s6 + $0x4a0] sm:$0xff]
      %v1759 = vld [vmem:[%s6 + $0x4a8] sm:$0xff]
      %v1760 = vld [vmem:[%s6 + $0x4b0] sm:$0xff]
      %v1761 = vld [vmem:[%s6 + $0x4b8] sm:$0xff]
      %v1762 = vld [vmem:[%s6 + $0x4c0] sm:$0xff]
      %v1763 = vld [vmem:[%s6 + $0x4c8] sm:$0xff]
      %v1764 = vld [vmem:[%s6 + $0x4d0] sm:$0xff]
      %v1765 = vld [vmem:[%s6 + $0x4d8] sm:$0xff]
      %v1766 = vld [vmem:[%s6 + $0x4e0] sm:$0xff]
      %v1767 = vld [vmem:[%s6 + $0x4e8] sm:$0xff]
      %v1768 = vld [vmem:[%s6 + $0x4f0] sm:$0xff]
      %v1769 = vld [vmem:[%s6 + $0x4f8] sm:$0xff]
      %v1770 = vld [vmem:[%s6 + $0x500] sm:$0xff]
      %v1771 = vld [vmem:[%s6 + $0x508] sm:$0xff]
      %v1772 = vld [vmem:[%s6 + $0x510] sm:$0xff]
      %v1773 = vld [vmem:[%s6 + $0x518] sm:$0xff]
      %v1774 = vld [vmem:[%s6 + $0x520] sm:$0xff]
      %v1775 = vld [vmem:[%s6 + $0x528] sm:$0xff]
      %v1776 = vld [vmem:[%s6 + $0x530] sm:$0xff]
      %v1777 = vld [vmem:[%s6 + $0x538] sm:$0xff]
      %v1778 = vld [vmem:[%s6 + $0x540] sm:$0xff]
      %v1779 = vld [vmem:[%s6 + $0x548] sm:$0xff]
      %v1780 = vld [vmem:[%s6 + $0x550] sm:$0xff]
      %v1781 = vld [vmem:[%s6 + $0x558] sm:$0xff]
      %v1782 = vld [vmem:[%s6 + $0x560] sm:$0xff]
      %v1783 = vld [vmem:[%s6 + $0x568] sm:$0xff]
      %v1784 = vld [vmem:[%s6 + $0x570] sm:$0xff]
      %v1785 = vld [vmem:[%s6 + $0x578] sm:$0xff]
      %v1786 = vld [vmem:[%s6 + $0x580] sm:$0xff]
      %v1787 = vld [vmem:[%s6 + $0x588] sm:$0xff]
      %v1788 = vld [vmem:[%s6 + $0x590] sm:$0xff]
      %v1789 = vld [vmem:[%s6 + $0x598] sm:$0xff]
      %v1790 = vld [vmem:[%s6 + $0x5a0] sm:$0xff]
      %v1791 = vld [vmem:[%s6 + $0x5a8] sm:$0xff]
      %v1792 = vld [vmem:[%s6 + $0x5b0] sm:$0xff]
      %v1793 = vld [vmem:[%s6 + $0x5b8] sm:$0xff]
      %v1794 = vld [vmem:[%s6 + $0x5c0] sm:$0xff]
      %v1795 = vld [vmem:[%s6 + $0x5c8] sm:$0xff]
      %v1796 = vld [vmem:[%s6 + $0x5d0] sm:$0xff]
      %v1797 = vld [vmem:[%s6 + $0x5d8] sm:$0xff]
      %v1798 = vld [vmem:[%s6 + $0x5e0] sm:$0xff]
      %v1799 = vld [vmem:[%s6 + $0x5e8] sm:$0xff]
      %v1800 = vld [vmem:[%s6 + $0x5f0] sm:$0xff]
      %v1801 = vld [vmem:[%s6 + $0x5f8] sm:$0xff]
      %v1802 = vld [vmem:[%s7] sm:$0xf]
      %v1804 = vperm.slane %v1802, 0
      %v1805 = vperm.slane %v1802, 1
      %v1806 = vperm.slane %v1802, 2
      %v1807 = vperm.slane %v1802, 3
      %1812 = vmatpush.msra.mxu0 %v1670
      %1813 = vmatpush.msra.mxu0 %v1666
      %1814 = vmatpush.msra.mxu0 %v1662
      %1815 = vmatpush.msra.mxu0 %v1658
      %1816 = vmatpush.msra.mxu0 %v1654
      %1817 = vmatpush.msra.mxu0 %v1650
      %1818 = vmatpush.msra.mxu0 %v1646
      %1819 = vmatpush.msra.mxu0 %v1642
      %1820 = vmatpush.msra.mxu0 %v1638
      %1821 = vmatpush.msra.mxu0 %v1634
      %1822 = vmatpush.msra.mxu0 %v1630
      %1823 = vmatpush.msra.mxu0 %v1626
      %1824 = vmatpush.msra.mxu0 %v1622
      %1825 = vmatpush.msra.mxu0 %v1618
      %1826 = vmatpush.msra.mxu0 %v1614
      %1827 = vmatpush.msra.mxu0 %v1610
      %1828 = vmatmul.f32.gmra.mxu0 %v1606
      %v1829 = vpop.f32.mrf.mxu0
      %v1830 = vadd.f32 %v1804, %v1829
      %1831 = vdwg.mxu0
      %1832 = vmatpush.msra.mxu0 %v1734
      %1833 = vmatpush.msra.mxu0 %v1730
      %1834 = vmatpush.msra.mxu0 %v1726
      %1835 = vmatpush.msra.mxu0 %v1722
      %1836 = vmatpush.msra.mxu0 %v1718
      %1837 = vmatpush.msra.mxu0 %v1714
      %1838 = vmatpush.msra.mxu0 %v1710
      %1839 = vmatpush.msra.mxu0 %v1706
      %1840 = vmatpush.msra.mxu0 %v1702
      %1841 = vmatpush.msra.mxu0 %v1698
      %1842 = vmatpush.msra.mxu0 %v1694
      %1843 = vmatpush.msra.mxu0 %v1690
      %1844 = vmatpush.msra.mxu0 %v1686
      %1845 = vmatpush.msra.mxu0 %v1682
      %1846 = vmatpush.msra.mxu0 %v1678
      %1847 = vmatpush.msra.mxu0 %v1674
      %1848 = vmatmul.f32.gmra.mxu0 %v1607
      %v1849 = vpop.f32.mrf.mxu0
      %v1850 = vadd.f32 %v1830, %v1849
      %1851 = vdwg.mxu0
      %1852 = vmatpush.msra.mxu0 %v1798
      %1853 = vmatpush.msra.mxu0 %v1794
      %1854 = vmatpush.msra.mxu0 %v1790
      %1855 = vmatpush.msra.mxu0 %v1786
      %1856 = vmatpush.msra.mxu0 %v1782
      %1857 = vmatpush.msra.mxu0 %v1778
      %1858 = vmatpush.msra.mxu0 %v1774
      %1859 = vmatpush.msra.mxu0 %v1770
      %1860 = vmatpush.msra.mxu0 %v1766
      %1861 = vmatpush.msra.mxu0 %v1762
      %1862 = vmatpush.msra.mxu0 %v1758
      %1863 = vmatpush.msra.mxu0 %v1754
      %1864 = vmatpush.msra.mxu0 %v1750
      %1865 = vmatpush.msra.mxu0 %v1746
      %1866 = vmatpush.msra.mxu0 %v1742
      %1867 = vmatpush.msra.mxu0 %v1738
      %1868 = vmatmul.f32.gmra.mxu0 %v1608
      %v1869 = vpop.f32.mrf.mxu0
      %v1870 = vadd.f32 %v1850, %v1869
      %1871 = vdwg.mxu0
      %1872 = vmatpush.msra.mxu0 %v1671
      %1873 = vmatpush.msra.mxu0 %v1667
      %1874 = vmatpush.msra.mxu0 %v1663
      %1875 = vmatpush.msra.mxu0 %v1659
      %1876 = vmatpush.msra.mxu0 %v1655
      %1877 = vmatpush.msra.mxu0 %v1651
      %1878 = vmatpush.msra.mxu0 %v1647
      %1879 = vmatpush.msra.mxu0 %v1643
      %1880 = vmatpush.msra.mxu0 %v1639
      %1881 = vmatpush.msra.mxu0 %v1635
      %1882 = vmatpush.msra.mxu0 %v1631
      %1883 = vmatpush.msra.mxu0 %v1627
      %1884 = vmatpush.msra.mxu0 %v1623
      %1885 = vmatpush.msra.mxu0 %v1619
      %1886 = vmatpush.msra.mxu0 %v1615
      %1887 = vmatpush.msra.mxu0 %v1611
      %1888 = vmatmul.f32.gmra.mxu0 %v1606
      %v1889 = vpop.f32.mrf.mxu0
      %v1890 = vadd.f32 %v1805, %v1889
      %1891 = vdwg.mxu0
      %1892 = vmatpush.msra.mxu0 %v1735
      %1893 = vmatpush.msra.mxu0 %v1731
      %1894 = vmatpush.msra.mxu0 %v1727
      %1895 = vmatpush.msra.mxu0 %v1723
      %1896 = vmatpush.msra.mxu0 %v1719
      %1897 = vmatpush.msra.mxu0 %v1715
      %1898 = vmatpush.msra.mxu0 %v1711
      %1899 = vmatpush.msra.mxu0 %v1707
      %1900 = vmatpush.msra.mxu0 %v1703
      %1901 = vmatpush.msra.mxu0 %v1699
      %1902 = vmatpush.msra.mxu0 %v1695
      %1903 = vmatpush.msra.mxu0 %v1691
      %1904 = vmatpush.msra.mxu0 %v1687
      %1905 = vmatpush.msra.mxu0 %v1683
      %1906 = vmatpush.msra.mxu0 %v1679
      %1907 = vmatpush.msra.mxu0 %v1675
      %1908 = vmatmul.f32.gmra.mxu0 %v1607
      %v1909 = vpop.f32.mrf.mxu0
      %v1910 = vadd.f32 %v1890, %v1909
      %1911 = vdwg.mxu0
      %1912 = vmatpush.msra.mxu0 %v1799
      %1913 = vmatpush.msra.mxu0 %v1795
      %1914 = vmatpush.msra.mxu0 %v1791
      %1915 = vmatpush.msra.mxu0 %v1787
      %1916 = vmatpush.msra.mxu0 %v1783
      %1917 = vmatpush.msra.mxu0 %v1779
      %1918 = vmatpush.msra.mxu0 %v1775
      %1919 = vmatpush.msra.mxu0 %v1771
      %1920 = vmatpush.msra.mxu0 %v1767
      %1921 = vmatpush.msra.mxu0 %v1763
      %1922 = vmatpush.msra.mxu0 %v1759
      %1923 = vmatpush.msra.mxu0 %v1755
      %1924 = vmatpush.msra.mxu0 %v1751
      %1925 = vmatpush.msra.mxu0 %v1747
      %1926 = vmatpush.msra.mxu0 %v1743
      %1927 = vmatpush.msra.mxu0 %v1739
      %1928 = vmatmul.f32.gmra.mxu0 %v1608
      %v1929 = vpop.f32.mrf.mxu0
      %v1930 = vadd.f32 %v1910, %v1929
      %1931 = vdwg.mxu0
      %1932 = vmatpush.msra.mxu0 %v1672
      %1933 = vmatpush.msra.mxu0 %v1668
      %1934 = vmatpush.msra.mxu0 %v1664
      %1935 = vmatpush.msra.mxu0 %v1660
      %1936 = vmatpush.msra.mxu0 %v1656
      %1937 = vmatpush.msra.mxu0 %v1652
      %1938 = vmatpush.msra.mxu0 %v1648
      %1939 = vmatpush.msra.mxu0 %v1644
      %1940 = vmatpush.msra.mxu0 %v1640
      %1941 = vmatpush.msra.mxu0 %v1636
      %1942 = vmatpush.msra.mxu0 %v1632
      %1943 = vmatpush.msra.mxu0 %v1628
      %1944 = vmatpush.msra.mxu0 %v1624
      %1945 = vmatpush.msra.mxu0 %v1620
      %1946 = vmatpush.msra.mxu0 %v1616
      %1947 = vmatpush.msra.mxu0 %v1612
      %1948 = vmatmul.f32.gmra.mxu0 %v1606
      %v1949 = vpop.f32.mrf.mxu0
      %v1950 = vadd.f32 %v1806, %v1949
      %1951 = vdwg.mxu0
      %1952 = vmatpush.msra.mxu0 %v1736
      %1953 = vmatpush.msra.mxu0 %v1732
      %1954 = vmatpush.msra.mxu0 %v1728
      %1955 = vmatpush.msra.mxu0 %v1724
      %1956 = vmatpush.msra.mxu0 %v1720
      %1957 = vmatpush.msra.mxu0 %v1716
      %1958 = vmatpush.msra.mxu0 %v1712
      %1959 = vmatpush.msra.mxu0 %v1708
      %1960 = vmatpush.msra.mxu0 %v1704
      %1961 = vmatpush.msra.mxu0 %v1700
      %1962 = vmatpush.msra.mxu0 %v1696
      %1963 = vmatpush.msra.mxu0 %v1692
      %1964 = vmatpush.msra.mxu0 %v1688
      %1965 = vmatpush.msra.mxu0 %v1684
      %1966 = vmatpush.msra.mxu0 %v1680
      %1967 = vmatpush.msra.mxu0 %v1676
      %1968 = vmatmul.f32.gmra.mxu0 %v1607
      %v1969 = vpop.f32.mrf.mxu0
      %v1970 = vadd.f32 %v1950, %v1969
      %1971 = vdwg.mxu0
      %1972 = vmatpush.msra.mxu0 %v1800
      %1973 = vmatpush.msra.mxu0 %v1796
      %1974 = vmatpush.msra.mxu0 %v1792
      %1975 = vmatpush.msra.mxu0 %v1788
      %1976 = vmatpush.msra.mxu0 %v1784
      %1977 = vmatpush.msra.mxu0 %v1780
      %1978 = vmatpush.msra.mxu0 %v1776
      %1979 = vmatpush.msra.mxu0 %v1772
      %1980 = vmatpush.msra.mxu0 %v1768
      %1981 = vmatpush.msra.mxu0 %v1764
      %1982 = vmatpush.msra.mxu0 %v1760
      %1983 = vmatpush.msra.mxu0 %v1756
      %1984 = vmatpush.msra.mxu0 %v1752
      %1985 = vmatpush.msra.mxu0 %v1748
      %1986 = vmatpush.msra.mxu0 %v1744
      %1987 = vmatpush.msra.mxu0 %v1740
      %1988 = vmatmul.f32.gmra.mxu0 %v1608
      %v1989 = vpop.f32.mrf.mxu0
      %v1990 = vadd.f32 %v1970, %v1989
      %1991 = vdwg.mxu0
      %1992 = vmatpush.msra.mxu0 %v1673
      %1993 = vmatpush.msra.mxu0 %v1669
      %1994 = vmatpush.msra.mxu0 %v1665
      %1995 = vmatpush.msra.mxu0 %v1661
      %1996 = vmatpush.msra.mxu0 %v1657
      %1997 = vmatpush.msra.mxu0 %v1653
      %1998 = vmatpush.msra.mxu0 %v1649
      %1999 = vmatpush.msra.mxu0 %v1645
      %2000 = vmatpush.msra.mxu0 %v1641
      %2001 = vmatpush.msra.mxu0 %v1637
      %2002 = vmatpush.msra.mxu0 %v1633
      %2003 = vmatpush.msra.mxu0 %v1629
      %2004 = vmatpush.msra.mxu0 %v1625
      %2005 = vmatpush.msra.mxu0 %v1621
      %2006 = vmatpush.msra.mxu0 %v1617
      %2007 = vmatpush.msra.mxu0 %v1613
      %2008 = vmatmul.f32.gmra.mxu0 %v1606
      %v2009 = vpop.f32.mrf.mxu0
      %v2010 = vadd.f32 %v1807, %v2009
      %2011 = vdwg.mxu0
      %2012 = vmatpush.msra.mxu0 %v1737
      %2013 = vmatpush.msra.mxu0 %v1733
      %2014 = vmatpush.msra.mxu0 %v1729
      %2015 = vmatpush.msra.mxu0 %v1725
      %2016 = vmatpush.msra.mxu0 %v1721
      %2017 = vmatpush.msra.mxu0 %v1717
      %2018 = vmatpush.msra.mxu0 %v1713
      %2019 = vmatpush.msra.mxu0 %v1709
      %2020 = vmatpush.msra.mxu0 %v1705
      %2021 = vmatpush.msra.mxu0 %v1701
      %2022 = vmatpush.msra.mxu0 %v1697
      %2023 = vmatpush.msra.mxu0 %v1693
      %2024 = vmatpush.msra.mxu0 %v1689
      %2025 = vmatpush.msra.mxu0 %v1685
      %2026 = vmatpush.msra.mxu0 %v1681
      %2027 = vmatpush.msra.mxu0 %v1677
      %2028 = vmatmul.f32.gmra.mxu0 %v1607
      %v2029 = vpop.f32.mrf.mxu0
      %v2030 = vadd.f32 %v2010, %v2029
      %2031 = vdwg.mxu0
      %2032 = vmatpush.msra.mxu0 %v1801
      %2033 = vmatpush.msra.mxu0 %v1797
      %2034 = vmatpush.msra.mxu0 %v1793
      %2035 = vmatpush.msra.mxu0 %v1789
      %2036 = vmatpush.msra.mxu0 %v1785
      %2037 = vmatpush.msra.mxu0 %v1781
      %2038 = vmatpush.msra.mxu0 %v1777
      %2039 = vmatpush.msra.mxu0 %v1773
      %2040 = vmatpush.msra.mxu0 %v1769
      %2041 = vmatpush.msra.mxu0 %v1765
      %2042 = vmatpush.msra.mxu0 %v1761
      %2043 = vmatpush.msra.mxu0 %v1757
      %2044 = vmatpush.msra.mxu0 %v1753
      %2045 = vmatpush.msra.mxu0 %v1749
      %2046 = vmatpush.msra.mxu0 %v1745
      %2047 = vmatpush.msra.mxu0 %v1741
      %2048 = vmatmul.f32.gmra.mxu0 %v1608
      %v2049 = vpop.f32.mrf.mxu0
      %v2050 = vadd.f32 %v2030, %v2049
      %2051 = vdwg.mxu0
      %v2052 = vsub.f32 0.0, %v1870
      %v2053 = vmul.f32 %v2052, 1.442695
      %v2054 = vpow.pop %v2053
      %v2055 = vadd.f32 %v2054, 1.0
      %v2056 = vrcp.pop %v2055
      %v2057 = vsub.f32 0.0, %v1930
      %v2058 = vmul.f32 %v2057, 1.442695
      %v2059 = vpow.pop %v2058
      %v2060 = vadd.f32 %v2059, 1.0
      %v2061 = vrcp.pop %v2060
      %v2062 = vtanh.pop %v1990
      %v2063 = vsub.f32 0.0, %v2050
      %v2064 = vmul.f32 %v2063, 1.442695
      %v2065 = vpow.pop %v2064
      %v2066 = vadd.f32 %v2065, 1.0
      %v2067 = vrcp.pop %v2066
      %v2068 = vmul.f32 %v2061, %v1609
      %v2069 = vmul.f32 %v2056, %v2062
      %v2070 = vadd.f32 %v2068, %v2069
      %v2071 = vtanh.pop %v2070
      %v2072 = vmul.f32 %v2067, %v2071
      %2073 = vst [vmem:[#allocation3] sm:$0xff] %v679
      %2074 = vst [vmem:[#allocation4] sm:$0xff] %v677
      %2075 = vst [vmem:[#allocation5] sm:$0xff] %v1606
      %2076 = vst [vmem:[#allocation5 + $0x8] sm:$0xff] %v1607
      %2077 = vst [vmem:[#allocation6] sm:$0xff] %v1602
      %2078 = vst [vmem:[#allocation6 + $0x8] sm:$0xff] %v1603
      %2079 = vst [vmem:[#allocation7] sm:$0xff] %v2072
      %2080 = vst [vmem:[#allocation8] sm:$0xff] %v2070
      %v2081 = vld [vmem:[%s8] sm:$0xff]
      %v2082 = vld [vmem:[%s8 + $0x8] sm:$0xff]
      %v2083 = vld [vmem:[%s8 + $0x10] sm:$0xff]
      %v2084 = vld [vmem:[%s8 + $0x18] sm:$0xff]
      %v2085 = vld [vmem:[%s8 + $0x20] sm:$0xff]
      %v2086 = vld [vmem:[%s8 + $0x28] sm:$0xff]
      %v2087 = vld [vmem:[%s8 + $0x30] sm:$0xff]
      %v2088 = vld [vmem:[%s8 + $0x38] sm:$0xff]
      %v2089 = vld [vmem:[%s8 + $0x40] sm:$0xff]
      %v2090 = vld [vmem:[%s8 + $0x48] sm:$0xff]
      %v2091 = vld [vmem:[%s8 + $0x50] sm:$0xff]
      %v2092 = vld [vmem:[%s8 + $0x58] sm:$0xff]
      %v2093 = vld [vmem:[%s8 + $0x60] sm:$0xff]
      %v2094 = vld [vmem:[%s8 + $0x68] sm:$0xff]
      %v2095 = vld [vmem:[%s8 + $0x70] sm:$0xff]
      %v2096 = vld [vmem:[%s8 + $0x78] sm:$0xff]
      %v2097 = vld [vmem:[%s9] sm:$0x1]
      %v2099 = vperm.slane %v2097, 0
      %2101 = vmatpush.msra.mxu0 %v2096
      %2102 = vmatpush.msra.mxu0 %v2095
      %2103 = vmatpush.msra.mxu0 %v2094
      %2104 = vmatpush.msra.mxu0 %v2093
      %2105 = vmatpush.msra.mxu0 %v2092
      %2106 = vmatpush.msra.mxu0 %v2091
      %2107 = vmatpush.msra.mxu0 %v2090
      %2108 = vmatpush.msra.mxu0 %v2089
      %2109 = vmatpush.msra.mxu0 %v2088
      %2110 = vmatpush.msra.mxu0 %v2087
      %2111 = vmatpush.msra.mxu0 %v2086
      %2112 = vmatpush.msra.mxu0 %v2085
      %2113 = vmatpush.msra.mxu0 %v2084
      %2114 = vmatpush.msra.mxu0 %v2083
      %2115 = vmatpush.msra.mxu0 %v2082
      %2116 = vmatpush.msra.mxu0 %v2081
      %2117 = vmatmul.f32.gmra.mxu0 %v2072
      %v2118 = vpop.f32.mrf.mxu0
      %v2119 = vadd.f32 %v2099, %v2118
      %2120 = vdwg.mxu0
      %v2121 = vmax.f32 %v2119, 0.0
      %2122 = vst [vmem:[%s10] sm:$0xff] %v2121
      %v2123 = vlaneseq
      %v2124 = vand.u32 %v2123, 127
      %v2125 = vcvt.s32.f32 %v2124
      %vm2126 = vcmp.lt.s32.totalorder %v2124, 17
      %v2127 = vsel %vm2126, %v2121, inf
      %vm2128 = vcmp.eq.s32.totalorder %v2124, 0
      %v2129 = vsel %vm2128, %v2127, 0.0
      %2130 = vadd.xlane.f32.xlu0 %v2129
      %v2131 = vpop.xlane.xlu0 %2130
      %vm2132 = vcmp.lt.f32.partialorder %v2127, %v2131
      %vm2133 = vcmp.eq.f32.partialorder %v2127, %v2131
      %vm2134 = vcmp.lt.s32.totalorder %v2124, 0
      %vm2135 = vmand %vm2133, %vm2134
      %vm2136 = vmor %vm2132, %vm2135
      %v2137 = vsel %vm2136, 1, 0
      %v2138 = vcvt.s32.f32 %v2137
      %2139 = vadd.xlane.f32.xlu0 %v2138
      %v2140 = vpop.xlane.xlu0 %2139
      %vm2141 = vcmp.eq.f32.partialorder %v2125, %v2140
      %v2142 = vsel %vm2141, 1, 0
      %v2143 = vcvt.s32.f32 %v2142
      %v2144 = vadd.f32 %v2143, 0.0
      %vm2145 = vcmp.eq.s32.totalorder %v2124, 1
      %v2146 = vsel %vm2145, %v2127, 0.0
      %2147 = vadd.xlane.f32.xlu0 %v2146
      %v2148 = vpop.xlane.xlu0 %2147
      %vm2149 = vcmp.lt.f32.partialorder %v2127, %v2148
      %vm2150 = vcmp.eq.f32.partialorder %v2127, %v2148
      %vm2151 = vcmp.lt.s32.totalorder %v2124, 1
      %vm2152 = vmand %vm2150, %vm2151
      %vm2153 = vmor %vm2149, %vm2152
      %v2154 = vsel %vm2153, 1, 0
      %v2155 = vcvt.s32.f32 %v2154
      %2156 = vadd.xlane.f32.xlu0 %v2155
      %v2157 = vpop.xlane.xlu0 %2156
      %vm2158 = vcmp.eq.f32.partialorder %v2125, %v2157
      %v2159 = vsel %vm2158, 1, 0
      %v2160 = vcvt.s32.f32 %v2159
      %v2161 = vadd.f32 %v2144, %v2160
      %vm2162 = vcmp.eq.s32.totalorder %v2124, 2
      %v2163 = vsel %vm2162, %v2127, 0.0
      %2164 = vadd.xlane.f32.xlu0 %v2163
      %v2165 = vpop.xlane.xlu0 %2164
      %vm2166 = vcmp.lt.f32.partialorder %v2127, %v2165
      %vm2167 = vcmp.eq.f32.partialorder %v2127, %v2165
      %vm2168 = vcmp.lt.s32.totalorder %v2124, 2
      %vm2169 = vmand %vm2167, %vm2168
      %vm2170 = vmor %vm2166, %vm2169
      %v2171 = vsel %vm2170, 1, 0
      %v2172 = vcvt.s32.f32 %v2171
      %2173 = vadd.xlane.f32.xlu0 %v2172
      %v2174 = vpop.xlane.xlu0 %2173
      %vm2175 = vcmp.eq.f32.partialorder %v2125, %v2174
      %v2176 = vsel %vm2175, 1, 0
      %v2177 = vcvt.s32.f32 %v2176
      %v2178 = vadd.f32 %v2161, %v2177
      %vm2179 = vcmp.eq.s32.totalorder %v2124, 3
      %v2180 = vsel %vm2179, %v2127, 0.0
      %2181 = vadd.xlane.f32.xlu0 %v2180
      %v2182 = vpop.xlane.xlu0 %2181
      %vm2183 = vcmp.lt.f32.partialorder %v2127, %v2182
      %vm2184 = vcmp.eq.f32.partialorder %v2127, %v2182
      %vm2185 = vcmp.lt.s32.totalorder %v2124, 3
      %vm2186 = vmand %vm2184, %vm2185
      %vm2187 = vmor %vm2183, %vm2186
      %v2188 = vsel %vm2187, 1, 0
      %v2189 = vcvt.s32.f32 %v2188
      %2190 = vadd.xlane.f32.xlu0 %v2189
      %v2191 = vpop.xlane.xlu0 %2190
      %vm2192 = vcmp.eq.f32.partialorder %v2125, %v2191
      %v2193 = vsel %vm2192, 1, 0
      %v2194 = vcvt.s32.f32 %v2193
      %v2195 = vadd.f32 %v2178, %v2194
      %2196 = vst [vmem:[#allocation2] sm:$0xff] %v2195
      // Predicated region
      $region65: #{lstm_model_forward.1} parent=59 // pred_check
        %p2197 = pneg %p249
      $region66: #{lstm_model_forward.1} parent=59 // pred_check_branch
        %2199 = sbr.rel (%p2197) target = $region68
      $region67: #{lstm_model_forward.1} parent=59 // pred_region
        _
      $region68: #{lstm_model_forward.1} parent=59 // pred_fallthru
        _
      // Predicated region
      $region69: #{lstm_model_forward.1} parent=59 // pred_check
        %p2200 = pneg %p249
      $region70: #{lstm_model_forward.1} parent=59 // pred_check_branch
        %2202 = sbr.rel (%p2200) target = $region72
      $region71: #{lstm_model_forward.1} parent=59 // pred_region
        _
      $region72: #{lstm_model_forward.1} parent=59 // pred_fallthru
        _
    $region60: #{lstm_model_forward.1} parent=5 // pred_fallthru
      _
    %p2203 = scmp.le.s32.totalorder 2, %s16
    // Predicated region
    $region73: #{lstm_model_forward.1} parent=5 // pred_check
      %p2204 = pneg %p2203
    $region74: #{lstm_model_forward.1} parent=5 // pred_check_branch
      %2206 = sbr.rel (%p2204) target = $region76
    $region75: #{lstm_model_forward.1} parent=5 // pred_region
      %s2207 = ssub.s32 %s16, 2
    $region76: #{lstm_model_forward.1} parent=5 // pred_fallthru
      _
  $region6: #{lstm_model_forward.1} parent=0 // loop_footer
    %s20 = sadd.s32 1, %s16
  $region7: #{lstm_model_forward.1} parent=0 // loop_footer_branch
    %15 = sbr.rel target = $region3
  $region8: #{lstm_model_forward.1} parent=0 // loop_exit
    _

</llo_original>
